<compile_context>
chip_gen: v6e
topology: v6e:2x2x1
jax: 0.10.0
libtpu: 0.0.40
codegen_flags: <defaults>
</compile_context>

<pallas_src>
import functools

import jax
import jax.numpy as jnp
from jax.experimental import pallas as pl
from jax.experimental.pallas import tpu as pltpu


def _round_up(a: int, b: int) -> int:
    return ((a + b - 1) // b) * b


def _choose_tiles(n: int):
    """Padded node count and (row, reduction) adjacency tile sizes.

    Guarantees: n_pad % tm == 0, n_pad % tk == 0, tm % 64 == 0 (int8 sublane
    packing), tk % 128 == 0, and >=2 row tiles whenever n_pad >= 256.
    """
    n_pad = _round_up(n, 128)
    if n_pad <= 2048:
        tk = n_pad                      # whole reduction axis in one tile
    else:
        n_pad = _round_up(n, 512)
        if n_pad % 2048 == 0:
            tk = 2048
        elif n_pad % 1024 == 0:
            tk = 1024
        else:
            tk = 512
    if n_pad > 512 and n_pad % 512 == 0:
        tm = 512
    elif n_pad >= 256:
        tm = n_pad // 2                 # multiple of 64, gives 2 row tiles
    else:
        tm = n_pad
    return n_pad, tm, tk


def _graphconv_kernel(a_ref, xk_ref, xi_ref, wrel_ref, wroot_ref, b_ref,
                      o_ref, acc_ref, *, apply_relu: bool):
    """One GraphConv layer, tiled over the adjacency (reduction axis last).

    a_ref:     [tm, tk]          int8 adjacency tile (row i = incoming edges)
    xk_ref:    [tk, F_in]        bf16 neighbor-feature rows (aggregation)
    xi_ref:    [tm, F_in]        bf16 own-feature rows (root term)
    wrel_ref:  [F_in, F_out_pad] bf16 weight on aggregated neighbor features
    wroot_ref: [F_in, F_out_pad] bf16 weight on the node's own features
    b_ref:     [1, F_out_pad]    f32 bias (rel branch only, like PyG)
    o_ref:     [tm, F_out_pad]   lane-dense padded output tile
    acc_ref:   [tm, F_in]        f32 accumulator at TRUE feature width
    """
    k = pl.program_id(1)

    @pl.when(k == 0)
    def _():
        acc_ref[...] = jnp.zeros_like(acc_ref)

    # int8 -> bf16 unpack on the VPU (exact for multiplicities <= 127), then
    # aggregate-first on the MXU with f32 accumulation: acc_i += A[i, k] @ X[k]
    a = a_ref[...].astype(jnp.bfloat16)
    acc_ref[...] += jnp.dot(a, xk_ref[...],
                            preferred_element_type=jnp.float32)

    @pl.when(k == pl.num_programs(1) - 1)
    def _():
        agg = acc_ref[...].astype(jnp.bfloat16)
        res = jnp.dot(agg, wrel_ref[...], preferred_element_type=jnp.float32)
        res = res + jnp.dot(xi_ref[...], wroot_ref[...],
                            preferred_element_type=jnp.float32)
        res = res + b_ref[...]
        if apply_relu:
            res = jnp.maximum(res, 0.0)
        o_ref[...] = res.astype(o_ref.dtype)


def graph_conv_layer(adj_i8, x_b, w_rel, w_root, bias, *, apply_relu,
                     out_dtype, tm, tk):
    """One GraphConv layer as a tiled pallas_call.

    adj_i8: [Np, Np] int8 (zero-padded), x_b: [Np, F_in] bf16 (zero-padded).
    Returns [Np, F_out].
    """
    n_pad = adj_i8.shape[0]
    f_in = x_b.shape[1]
    f_out = w_rel.shape[1]

    # Lane-dense output: pad F_out up to a multiple of 128, slice afterwards.
    f_out_pad = _round_up(f_out, 128)
    pad = f_out_pad - f_out
    w_rel_p = jnp.pad(w_rel, ((0, 0), (0, pad))).astype(jnp.bfloat16)
    w_root_p = jnp.pad(w_root, ((0, 0), (0, pad))).astype(jnp.bfloat16)
    bias_p = jnp.pad(bias, (0, pad)).reshape(1, f_out_pad).astype(jnp.float32)

    grid = (n_pad // tm, n_pad // tk)

    # VMEM limit from the hardware with headroom (~52 MiB on v7x, ~105 on v6e).
    try:
        vmem_cap = int(pltpu.get_tpu_info().vmem_capacity_bytes)
    except Exception:  # pragma: no cover - conservative fallback
        vmem_cap = 64 * 1024 * 1024
    vmem_limit = max(int(vmem_cap * 0.82), 32 * 1024 * 1024)

    kernel = functools.partial(_graphconv_kernel, apply_relu=apply_relu)

    out_padded = pl.pallas_call(
        kernel,
        out_shape=jax.ShapeDtypeStruct((n_pad, f_out_pad), out_dtype),
        grid=grid,
        in_specs=[
            pl.BlockSpec((tm, tk), lambda i, k: (i, k)),        # A[i, k] int8
            pl.BlockSpec((tk, f_in), lambda i, k: (k, 0)),      # X rows (aggr)
            pl.BlockSpec((tm, f_in), lambda i, k: (i, 0)),      # X rows (root)
            pl.BlockSpec((f_in, f_out_pad), lambda i, k: (0, 0)),
            pl.BlockSpec((f_in, f_out_pad), lambda i, k: (0, 0)),
            pl.BlockSpec((1, f_out_pad), lambda i, k: (0, 0)),
        ],
        out_specs=pl.BlockSpec((tm, f_out_pad), lambda i, k: (i, 0)),
        scratch_shapes=[pltpu.VMEM((tm, f_in), jnp.float32)],
        compiler_params=pltpu.CompilerParams(
            dimension_semantics=("parallel", "arbitrary"),
            vmem_limit_bytes=vmem_limit),
    )(adj_i8, x_b, x_b, w_rel_p, w_root_p, bias_p)

    return out_padded[:, :f_out]


@jax.jit
def graph_conv_net(x, edge_index, params):
    """Full GraphConvNet forward (eval mode: dropout p=0.5 is identity)."""
    n, _ = x.shape
    n_pad, tm, tk = _choose_tiles(n)

    src = edge_index[0]
    dst = edge_index[1]
    # Dense adjacency built ONCE, directly in the int8 storage dtype and padded
    # to the tile grid: A[dst, src] += 1 (messages flow src -> dst).
    # Edge multiplicities <= 127 stay exact in int8.
    adj = jnp.zeros((n_pad, n_pad), dtype=jnp.int8).at[dst, src].add(1)

    x_b = jnp.pad(x, ((0, n_pad - n), (0, 0))).astype(jnp.bfloat16)

    h = graph_conv_layer(adj, x_b,
                         params["w1_rel"], params["w1_root"], params["b1"],
                         apply_relu=True, out_dtype=jnp.bfloat16, tm=tm, tk=tk)
    # TODO(synk): dropout(p=0.5) only active in training mode; eval => identity.
    out = graph_conv_layer(adj, h,
                           params["w2_rel"], params["w2_root"], params["b2"],
                           apply_relu=False, out_dtype=jnp.float32, tm=tm, tk=tk)
    return out[:n]


def graph_conv_net_ref(x, edge_index, params):
    """Pure-JAX f32 reference for a sanity check."""
    n = x.shape[0]
    adj = jnp.zeros((n, n), jnp.float32).at[edge_index[1], edge_index[0]].add(1.0)

    def layer(a, h, w_rel, w_root, b):
        return (a @ h) @ w_rel + h @ w_root + b

    h = jax.nn.relu(layer(adj, x, params["w1_rel"], params["w1_root"],
                          params["b1"]))
    return layer(adj, h, params["w2_rel"], params["w2_root"], params["b2"])


def init_params(key, num_features, hidden_channels, num_classes):
    ks = jax.random.split(key, 6)
    scale1 = 1.0 / jnp.sqrt(num_features)
    scale2 = 1.0 / jnp.sqrt(hidden_channels)
    return {
        "w1_rel": jax.random.uniform(ks[0], (num_features, hidden_channels),
                                     jnp.float32, -scale1, scale1),
        "w1_root": jax.random.uniform(ks[1], (num_features, hidden_channels),
                                      jnp.float32, -scale1, scale1),
        "b1": jax.random.uniform(ks[2], (hidden_channels,), jnp.float32,
                                 -scale1, scale1),
        "w2_rel": jax.random.uniform(ks[3], (hidden_channels, num_classes),
                                     jnp.float32, -scale2, scale2),
        "w2_root": jax.random.uniform(ks[4], (hidden_channels, num_classes),
                                      jnp.float32, -scale2, scale2),
        "b2": jax.random.uniform(ks[5], (num_classes,), jnp.float32,
                                 -scale2, scale2),
    }


if __name__ == "__main__":
    num_nodes = 16
    num_features = 8
    hidden_channels = 32
    num_classes = 4

    key = jax.random.PRNGKey(0)
    k_x, k_p = jax.random.split(key)

    # Deterministic node features.
    x = jax.random.normal(k_x, (num_nodes, num_features), jnp.float32)

    # Deterministic graph: bidirectional ring over 16 nodes -> edge_index (2, 32)
    idx = jnp.arange(num_nodes)
    src = jnp.concatenate([idx, (idx + 1) % num_nodes])
    dst = jnp.concatenate([(idx + 1) % num_nodes, idx])
    edge_index = jnp.stack([src, dst], axis=0).astype(jnp.int32)

    params = init_params(k_p, num_features, hidden_channels, num_classes)

    out = graph_conv_net(x, edge_index, params)
    out = jax.block_until_ready(out)
    assert out.shape == (num_nodes, num_classes)

    # Loose tolerance: kernel uses bf16 MXU operands with f32 accumulation.
    ref = graph_conv_net_ref(x, edge_index, params)
    max_err = float(jnp.max(jnp.abs(out - ref)))
    assert max_err < 0.1, f"max abs error vs reference: {max_err}"

    print("KERNEL_OK")
</pallas_src>

<mosaic_0001>
module attributes {stable_mosaic.version = 11 : i64} {
  func.func @_graphconv_kernel(%arg0: i32, %arg1: i32, %arg2: memref<128x128xi8, #tpu.memory_space<vmem>>, %arg3: memref<128x32xbf16, #tpu.memory_space<vmem>>, %arg4: memref<128x32xbf16, #tpu.memory_space<vmem>>, %arg5: memref<32x128xbf16, #tpu.memory_space<vmem>>, %arg6: memref<32x128xbf16, #tpu.memory_space<vmem>>, %arg7: memref<1x128xf32, #tpu.memory_space<vmem>>, %arg8: memref<128x128xf32, #tpu.memory_space<vmem>>, %arg9: memref<128x32xf32, #tpu.memory_space<vmem>>) attributes {dimension_semantics = [#tpu.dimension_semantics<parallel>, #tpu.dimension_semantics<arbitrary>], iteration_bounds = array<i64: 1, 1>, scalar_prefetch = 0 : i64, scratch_operands = 1 : i64, tpu.core_type = #tpu.core_type<tc>, window_params = [{transform_indices = @transform_0, window_bounds = array<i64: 128, 128>}, {transform_indices = @transform_1, window_bounds = array<i64: 128, 32>}, {transform_indices = @transform_2, window_bounds = array<i64: 128, 32>}, {pipeline_mode = #tpu.pipeline_mode<synchronous>, transform_indices = @transform_3, window_bounds = array<i64: 32, 128>}, {pipeline_mode = #tpu.pipeline_mode<synchronous>, transform_indices = @transform_4, window_bounds = array<i64: 32, 128>}, {pipeline_mode = #tpu.pipeline_mode<synchronous>, transform_indices = @transform_5, window_bounds = array<i64: 1, 128>}, {transform_indices = @transform_6, window_bounds = array<i64: 128, 128>}]} {
    %c0_i32 = arith.constant 0 : i32
    %0 = arith.cmpi eq, %arg1, %c0_i32 : i32
    %1 = arith.extui %0 : i1 to i32
    %c0_i32_0 = arith.constant 0 : i32
    %2 = arith.cmpi ne, %1, %c0_i32_0 : i32
    scf.if %2 {
      %cst_10 = arith.constant 0.000000e+00 : f32
      %13 = vector.broadcast %cst_10 : f32 to vector<128x32xf32>
      %c0_11 = arith.constant 0 : index
      %c0_12 = arith.constant 0 : index
      %14 = vector.load %arg9[%c0_11, %c0_12] : memref<128x32xf32, #tpu.memory_space<vmem>>, vector<128x32xf32>
      tpu.vector_store %arg9[%c0_11, %c0_12], %13 {strides = array<i32>} : memref<128x32xf32, #tpu.memory_space<vmem>>, vector<128x32xf32>,
    } else {
    }
    %c0 = arith.constant 0 : index
    %c0_1 = arith.constant 0 : index
    %3 = vector.load %arg2[%c0, %c0_1] : memref<128x128xi8, #tpu.memory_space<vmem>>, vector<128x128xi8>
    %4 = arith.sitofp %3 : vector<128x128xi8> to vector<128x128xbf16>
    %c0_2 = arith.constant 0 : index
    %c0_3 = arith.constant 0 : index
    %5 = vector.load %arg9[%c0_2, %c0_3] : memref<128x32xf32, #tpu.memory_space<vmem>>, vector<128x32xf32>
    %c0_4 = arith.constant 0 : index
    %c0_5 = arith.constant 0 : index
    %6 = vector.load %arg3[%c0_4, %c0_5] : memref<128x32xbf16, #tpu.memory_space<vmem>>, vector<128x32xbf16>
    %cst = arith.constant dense<0.000000e+00> : vector<128x32xf32>
    %7 = tpu.matmul %4, %6, %cst {dimension_numbers = #tpu.dot_dimension_numbers<[1], [0], [0], [1], [0, 0, 1, 1], [], []>} : vector<128x128xbf16>, vector<128x32xbf16>, vector<128x32xf32> -> vector<128x32xf32>
    %8 = arith.addf %5, %7 : vector<128x32xf32>
    %c0_6 = arith.constant 0 : index
    %c0_7 = arith.constant 0 : index
    %9 = vector.load %arg9[%c0_6, %c0_7] : memref<128x32xf32, #tpu.memory_space<vmem>>, vector<128x32xf32>
    tpu.vector_store %arg9[%c0_6, %c0_7], %8 {strides = array<i32>} : memref<128x32xf32, #tpu.memory_space<vmem>>, vector<128x32xf32>,
    %c0_i32_8 = arith.constant 0 : i32
    %10 = arith.cmpi eq, %arg1, %c0_i32_8 : i32
    %11 = arith.extui %10 : i1 to i32
    %c0_i32_9 = arith.constant 0 : i32
    %12 = arith.cmpi ne, %11, %c0_i32_9 : i32
    scf.if %12 {
      %c0_10 = arith.constant 0 : index
      %c0_11 = arith.constant 0 : index
      %13 = vector.load %arg9[%c0_10, %c0_11] : memref<128x32xf32, #tpu.memory_space<vmem>>, vector<128x32xf32>
      %14 = arith.truncf %13 : vector<128x32xf32> to vector<128x32xbf16>
      %c0_12 = arith.constant 0 : index
      %c0_13 = arith.constant 0 : index
      %15 = vector.load %arg5[%c0_12, %c0_13] : memref<32x128xbf16, #tpu.memory_space<vmem>>, vector<32x128xbf16>
      %cst_14 = arith.constant dense<0.000000e+00> : vector<128x128xf32>
      %16 = tpu.matmul %14, %15, %cst_14 {dimension_numbers = #tpu.dot_dimension_numbers<[1], [0], [0], [1], [0, 0, 1, 1], [], []>} : vector<128x32xbf16>, vector<32x128xbf16>, vector<128x128xf32> -> vector<128x128xf32>
      %c0_15 = arith.constant 0 : index
      %c0_16 = arith.constant 0 : index
      %17 = vector.load %arg4[%c0_15, %c0_16] : memref<128x32xbf16, #tpu.memory_space<vmem>>, vector<128x32xbf16>
      %c0_17 = arith.constant 0 : index
      %c0_18 = arith.constant 0 : index
      %18 = vector.load %arg6[%c0_17, %c0_18] : memref<32x128xbf16, #tpu.memory_space<vmem>>, vector<32x128xbf16>
      %cst_19 = arith.constant dense<0.000000e+00> : vector<128x128xf32>
      %19 = tpu.matmul %17, %18, %cst_19 {dimension_numbers = #tpu.dot_dimension_numbers<[1], [0], [0], [1], [0, 0, 1, 1], [], []>} : vector<128x32xbf16>, vector<32x128xbf16>, vector<128x128xf32> -> vector<128x128xf32>
      %20 = arith.addf %16, %19 : vector<128x128xf32>
      %c0_20 = arith.constant 0 : index
      %c0_21 = arith.constant 0 : index
      %21 = vector.load %arg7[%c0_20, %c0_21] : memref<1x128xf32, #tpu.memory_space<vmem>>, vector<1x128xf32>
      %22 = vector.broadcast %21 : vector<1x128xf32> to vector<128x128xf32>
      %23 = arith.addf %20, %22 : vector<128x128xf32>
      %c0_22 = arith.constant 0 : index
      %c0_23 = arith.constant 0 : index
      %24 = vector.load %arg8[%c0_22, %c0_23] : memref<128x128xf32, #tpu.memory_space<vmem>>, vector<128x128xf32>
      tpu.vector_store %arg8[%c0_22, %c0_23], %23 {strides = array<i32>} : memref<128x128xf32, #tpu.memory_space<vmem>>, vector<128x128xf32>,
    } else {
    }
    return
  }
  func.func @transform_0(%arg0: i32, %arg1: i32) -> (i32, i32) {
    %c0_i32 = arith.constant 0 : i32
    return %arg0, %arg1 : i32, i32
  }
  func.func @transform_1(%arg0: i32, %arg1: i32) -> (i32, i32) {
    %c0_i32 = arith.constant 0 : i32
    %c0_i32_0 = arith.constant 0 : i32
    return %arg1, %c0_i32 : i32, i32
  }
  func.func @transform_2(%arg0: i32, %arg1: i32) -> (i32, i32) {
    %c0_i32 = arith.constant 0 : i32
    %c0_i32_0 = arith.constant 0 : i32
    return %arg0, %c0_i32 : i32, i32
  }
  func.func @transform_3(%arg0: i32, %arg1: i32) -> (i32, i32) {
    %c0_i32 = arith.constant 0 : i32
    %c0_i32_0 = arith.constant 0 : i32
    %c0_i32_1 = arith.constant 0 : i32
    return %c0_i32, %c0_i32_0 : i32, i32
  }
  func.func @transform_4(%arg0: i32, %arg1: i32) -> (i32, i32) {
    %c0_i32 = arith.constant 0 : i32
    %c0_i32_0 = arith.constant 0 : i32
    %c0_i32_1 = arith.constant 0 : i32
    return %c0_i32, %c0_i32_0 : i32, i32
  }
  func.func @transform_5(%arg0: i32, %arg1: i32) -> (i32, i32) {
    %c0_i32 = arith.constant 0 : i32
    %c0_i32_0 = arith.constant 0 : i32
    %c0_i32_1 = arith.constant 0 : i32
    return %c0_i32, %c0_i32_0 : i32, i32
  }
  func.func @transform_6(%arg0: i32, %arg1: i32) -> (i32, i32) {
    %c0_i32 = arith.constant 0 : i32
    %c0_i32_0 = arith.constant 0 : i32
    return %arg0, %c0_i32 : i32, i32
  }
}

module attributes {stable_mosaic.version = 11 : i64} {
  func.func @_graphconv_kernel(%arg0: i32, %arg1: i32, %arg2: memref<128x128xi8, #tpu.memory_space<vmem>>, %arg3: memref<128x8xbf16, #tpu.memory_space<vmem>>, %arg4: memref<128x8xbf16, #tpu.memory_space<vmem>>, %arg5: memref<8x128xbf16, #tpu.memory_space<vmem>>, %arg6: memref<8x128xbf16, #tpu.memory_space<vmem>>, %arg7: memref<1x128xf32, #tpu.memory_space<vmem>>, %arg8: memref<128x128xbf16, #tpu.memory_space<vmem>>, %arg9: memref<128x8xf32, #tpu.memory_space<vmem>>) attributes {dimension_semantics = [#tpu.dimension_semantics<parallel>, #tpu.dimension_semantics<arbitrary>], iteration_bounds = array<i64: 1, 1>, scalar_prefetch = 0 : i64, scratch_operands = 1 : i64, tpu.core_type = #tpu.core_type<tc>, window_params = [{transform_indices = @transform_0, window_bounds = array<i64: 128, 128>}, {transform_indices = @transform_1, window_bounds = array<i64: 128, 8>}, {transform_indices = @transform_2, window_bounds = array<i64: 128, 8>}, {pipeline_mode = #tpu.pipeline_mode<synchronous>, transform_indices = @transform_3, window_bounds = array<i64: 8, 128>}, {pipeline_mode = #tpu.pipeline_mode<synchronous>, transform_indices = @transform_4, window_bounds = array<i64: 8, 128>}, {pipeline_mode = #tpu.pipeline_mode<synchronous>, transform_indices = @transform_5, window_bounds = array<i64: 1, 128>}, {transform_indices = @transform_6, window_bounds = array<i64: 128, 128>}]} {
    %c0_i32 = arith.constant 0 : i32
    %0 = arith.cmpi eq, %arg1, %c0_i32 : i32
    %1 = arith.extui %0 : i1 to i32
    %c0_i32_0 = arith.constant 0 : i32
    %2 = arith.cmpi ne, %1, %c0_i32_0 : i32
    scf.if %2 {
      %cst_10 = arith.constant 0.000000e+00 : f32
      %13 = vector.broadcast %cst_10 : f32 to vector<128x8xf32>
      %c0_11 = arith.constant 0 : index
      %c0_12 = arith.constant 0 : index
      %14 = vector.load %arg9[%c0_11, %c0_12] : memref<128x8xf32, #tpu.memory_space<vmem>>, vector<128x8xf32>
      tpu.vector_store %arg9[%c0_11, %c0_12], %13 {strides = array<i32>} : memref<128x8xf32, #tpu.memory_space<vmem>>, vector<128x8xf32>,
    } else {
    }
    %c0 = arith.constant 0 : index
    %c0_1 = arith.constant 0 : index
    %3 = vector.load %arg2[%c0, %c0_1] : memref<128x128xi8, #tpu.memory_space<vmem>>, vector<128x128xi8>
    %4 = arith.sitofp %3 : vector<128x128xi8> to vector<128x128xbf16>
    %c0_2 = arith.constant 0 : index
    %c0_3 = arith.constant 0 : index
    %5 = vector.load %arg9[%c0_2, %c0_3] : memref<128x8xf32, #tpu.memory_space<vmem>>, vector<128x8xf32>
    %c0_4 = arith.constant 0 : index
    %c0_5 = arith.constant 0 : index
    %6 = vector.load %arg3[%c0_4, %c0_5] : memref<128x8xbf16, #tpu.memory_space<vmem>>, vector<128x8xbf16>
    %cst = arith.constant dense<0.000000e+00> : vector<128x8xf32>
    %7 = tpu.matmul %4, %6, %cst {dimension_numbers = #tpu.dot_dimension_numbers<[1], [0], [0], [1], [0, 0, 1, 1], [], []>} : vector<128x128xbf16>, vector<128x8xbf16>, vector<128x8xf32> -> vector<128x8xf32>
    %8 = arith.addf %5, %7 : vector<128x8xf32>
    %c0_6 = arith.constant 0 : index
    %c0_7 = arith.constant 0 : index
    %9 = vector.load %arg9[%c0_6, %c0_7] : memref<128x8xf32, #tpu.memory_space<vmem>>, vector<128x8xf32>
    tpu.vector_store %arg9[%c0_6, %c0_7], %8 {strides = array<i32>} : memref<128x8xf32, #tpu.memory_space<vmem>>, vector<128x8xf32>,
    %c0_i32_8 = arith.constant 0 : i32
    %10 = arith.cmpi eq, %arg1, %c0_i32_8 : i32
    %11 = arith.extui %10 : i1 to i32
    %c0_i32_9 = arith.constant 0 : i32
    %12 = arith.cmpi ne, %11, %c0_i32_9 : i32
    scf.if %12 {
      %c0_10 = arith.constant 0 : index
      %c0_11 = arith.constant 0 : index
      %13 = vector.load %arg9[%c0_10, %c0_11] : memref<128x8xf32, #tpu.memory_space<vmem>>, vector<128x8xf32>
      %14 = arith.truncf %13 : vector<128x8xf32> to vector<128x8xbf16>
      %c0_12 = arith.constant 0 : index
      %c0_13 = arith.constant 0 : index
      %15 = vector.load %arg5[%c0_12, %c0_13] : memref<8x128xbf16, #tpu.memory_space<vmem>>, vector<8x128xbf16>
      %cst_14 = arith.constant dense<0.000000e+00> : vector<128x128xf32>
      %16 = tpu.matmul %14, %15, %cst_14 {dimension_numbers = #tpu.dot_dimension_numbers<[1], [0], [0], [1], [0, 0, 1, 1], [], []>} : vector<128x8xbf16>, vector<8x128xbf16>, vector<128x128xf32> -> vector<128x128xf32>
      %c0_15 = arith.constant 0 : index
      %c0_16 = arith.constant 0 : index
      %17 = vector.load %arg4[%c0_15, %c0_16] : memref<128x8xbf16, #tpu.memory_space<vmem>>, vector<128x8xbf16>
      %c0_17 = arith.constant 0 : index
      %c0_18 = arith.constant 0 : index
      %18 = vector.load %arg6[%c0_17, %c0_18] : memref<8x128xbf16, #tpu.memory_space<vmem>>, vector<8x128xbf16>
      %cst_19 = arith.constant dense<0.000000e+00> : vector<128x128xf32>
      %19 = tpu.matmul %17, %18, %cst_19 {dimension_numbers = #tpu.dot_dimension_numbers<[1], [0], [0], [1], [0, 0, 1, 1], [], []>} : vector<128x8xbf16>, vector<8x128xbf16>, vector<128x128xf32> -> vector<128x128xf32>
      %20 = arith.addf %16, %19 : vector<128x128xf32>
      %c0_20 = arith.constant 0 : index
      %c0_21 = arith.constant 0 : index
      %21 = vector.load %arg7[%c0_20, %c0_21] : memref<1x128xf32, #tpu.memory_space<vmem>>, vector<1x128xf32>
      %22 = vector.broadcast %21 : vector<1x128xf32> to vector<128x128xf32>
      %23 = arith.addf %20, %22 : vector<128x128xf32>
      %cst_22 = arith.constant 0.000000e+00 : f32
      %24 = vector.broadcast %cst_22 : f32 to vector<128x128xf32>
      %25 = arith.maximumf %23, %24 : vector<128x128xf32>
      %26 = arith.truncf %25 : vector<128x128xf32> to vector<128x128xbf16>
      %c0_23 = arith.constant 0 : index
      %c0_24 = arith.constant 0 : index
      %27 = vector.load %arg8[%c0_23, %c0_24] : memref<128x128xbf16, #tpu.memory_space<vmem>>, vector<128x128xbf16>
      tpu.vector_store %arg8[%c0_23, %c0_24], %26 {strides = array<i32>} : memref<128x128xbf16, #tpu.memory_space<vmem>>, vector<128x128xbf16>,
    } else {
    }
    return
  }
  func.func @transform_0(%arg0: i32, %arg1: i32) -> (i32, i32) {
    %c0_i32 = arith.constant 0 : i32
    return %arg0, %arg1 : i32, i32
  }
  func.func @transform_1(%arg0: i32, %arg1: i32) -> (i32, i32) {
    %c0_i32 = arith.constant 0 : i32
    %c0_i32_0 = arith.constant 0 : i32
    return %arg1, %c0_i32 : i32, i32
  }
  func.func @transform_2(%arg0: i32, %arg1: i32) -> (i32, i32) {
    %c0_i32 = arith.constant 0 : i32
    %c0_i32_0 = arith.constant 0 : i32
    return %arg0, %c0_i32 : i32, i32
  }
  func.func @transform_3(%arg0: i32, %arg1: i32) -> (i32, i32) {
    %c0_i32 = arith.constant 0 : i32
    %c0_i32_0 = arith.constant 0 : i32
    %c0_i32_1 = arith.constant 0 : i32
    return %c0_i32, %c0_i32_0 : i32, i32
  }
  func.func @transform_4(%arg0: i32, %arg1: i32) -> (i32, i32) {
    %c0_i32 = arith.constant 0 : i32
    %c0_i32_0 = arith.constant 0 : i32
    %c0_i32_1 = arith.constant 0 : i32
    return %c0_i32, %c0_i32_0 : i32, i32
  }
  func.func @transform_5(%arg0: i32, %arg1: i32) -> (i32, i32) {
    %c0_i32 = arith.constant 0 : i32
    %c0_i32_0 = arith.constant 0 : i32
    %c0_i32_1 = arith.constant 0 : i32
    return %c0_i32, %c0_i32_0 : i32, i32
  }
  func.func @transform_6(%arg0: i32, %arg1: i32) -> (i32, i32) {
    %c0_i32 = arith.constant 0 : i32
    %c0_i32_0 = arith.constant 0 : i32
    return %arg0, %c0_i32 : i32, i32
  }
}

</mosaic_0001>

<llo_original>
// kernel: graph_conv_net.3
$region0: #{graph_conv_net.3}
  #allocation0 [shape = 'u32[]', space=smem, size = 0x4, offset = 0x4, fixed_abs, tag = 'smem constant byte address 0x4 - core index']
  #allocation1 [shape = 'u32[144,128]{1,0:T(1,128)}', space=vmem, size = 0x12000, scoped, tag = 'internal scratch']
  #allocation2 [shape = 'f32[128,32]{1,0:T(8,128)}', space=vmem, size = 0x10000, scoped, tag = 'scratch operand']
  %s0 = inlined_call_operand.vmem [shape: s8[128,128], index: 0, kind: input, shape index: {}]
  %s1 = inlined_call_operand.vmem [shape: bf16[128,32], index: 1, kind: input, shape index: {}, may-alias: {1,2}]
  %s2 = inlined_call_operand.vmem [shape: bf16[128,32], index: 2, kind: input, shape index: {}, may-alias: {1,2}]
  %s3 = inlined_call_operand.vmem [shape: bf16[32,128], index: 3, kind: input, shape index: {}]
  %s4 = inlined_call_operand.vmem [shape: bf16[32,128], index: 4, kind: input, shape index: {}]
  %s5 = inlined_call_operand.vmem [shape: f32[1,128], index: 5, kind: input, shape index: {}]
  %s6 = inlined_call_operand.vmem [shape: f32[128,128], index: 6, kind: output, shape index: {}]
  %s7 = sld [smem:[#allocation0]]
  $region42: #{graph_conv_net.3} parent=0
    _
  %s9 = ssub.s32 1, %s7
  %s10 = scalar_select 0, %s9, %s7
  // Predicated region
  $region2: #{graph_conv_net.3} parent=0 // pred_check
    _
  $region3: #{graph_conv_net.3} parent=0 // pred_check_branch
    %12 = sbr.rel (0) target = $region5
  $region4: #{graph_conv_net.3} parent=0 // pred_region
    _
  $region5: #{graph_conv_net.3} parent=0 // pred_fallthru
    _
  // Predicated region
  $region6: #{graph_conv_net.3} parent=0 // pred_check
    _
  $region7: #{graph_conv_net.3} parent=0 // pred_check_branch
    %14 = sbr.rel (0) target = $region9
  $region8: #{graph_conv_net.3} parent=0 // pred_region
    _
  $region9: #{graph_conv_net.3} parent=0 // pred_fallthru
    _
  // Predicated region
  $region10: #{graph_conv_net.3} parent=0 // pred_check
    _
  $region11: #{graph_conv_net.3} parent=0 // pred_check_branch
    %16 = sbr.rel (0) target = $region13
  $region12: #{graph_conv_net.3} parent=0 // pred_region
    _
  $region13: #{graph_conv_net.3} parent=0 // pred_fallthru
    _
  // Predicated region
  $region14: #{graph_conv_net.3} parent=0 // pred_check
    _
  $region15: #{graph_conv_net.3} parent=0 // pred_check_branch
    %18 = sbr.rel (0) target = $region17
  $region16: #{graph_conv_net.3} parent=0 // pred_region
    _
  $region17: #{graph_conv_net.3} parent=0 // pred_fallthru
    _
  // Predicated region
  $region18: #{graph_conv_net.3} parent=0 // pred_check
    _
  $region19: #{graph_conv_net.3} parent=0 // pred_check_branch
    %20 = sbr.rel (0) target = $region21
  $region20: #{graph_conv_net.3} parent=0 // pred_region
    _
  $region21: #{graph_conv_net.3} parent=0 // pred_fallthru
    _
  // Predicated region
  $region22: #{graph_conv_net.3} parent=0 // pred_check
    _
  $region23: #{graph_conv_net.3} parent=0 // pred_check_branch
    %22 = sbr.rel (0) target = $region25
  $region24: #{graph_conv_net.3} parent=0 // pred_region
    _
  $region25: #{graph_conv_net.3} parent=0 // pred_fallthru
    _
  %p24 = scmp.eq.s32.totalorder 0, 0
  // Predicated region
  $region26: #{graph_conv_net.3} parent=0 // pred_check
    %p25 = pneg %p24
  $region27: #{graph_conv_net.3} parent=0 // pred_check_branch
    %27 = sbr.rel (%p25) target = $region29
  $region28: #{graph_conv_net.3} parent=0 // pred_region
    %vm28 = vcmask 261120
    %29 = vst.msk [vmem:[#allocation2] sm:$0xff] %vm28, 0.0
    %30 = vst.msk [vmem:[#allocation2 + $0x8] sm:$0xff] %vm28, 0.0
    %31 = vst.msk [vmem:[#allocation2 + $0x10] sm:$0xff] %vm28, 0.0
    %32 = vst.msk [vmem:[#allocation2 + $0x18] sm:$0xff] %vm28, 0.0
    %33 = vst.msk [vmem:[#allocation2 + $0x20] sm:$0xff] %vm28, 0.0
    %34 = vst.msk [vmem:[#allocation2 + $0x28] sm:$0xff] %vm28, 0.0
    %35 = vst.msk [vmem:[#allocation2 + $0x30] sm:$0xff] %vm28, 0.0
    %36 = vst.msk [vmem:[#allocation2 + $0x38] sm:$0xff] %vm28, 0.0
    %37 = vst.msk [vmem:[#allocation2 + $0x40] sm:$0xff] %vm28, 0.0
    %38 = vst.msk [vmem:[#allocation2 + $0x48] sm:$0xff] %vm28, 0.0
    %39 = vst.msk [vmem:[#allocation2 + $0x50] sm:$0xff] %vm28, 0.0
    %40 = vst.msk [vmem:[#allocation2 + $0x58] sm:$0xff] %vm28, 0.0
    %41 = vst.msk [vmem:[#allocation2 + $0x60] sm:$0xff] %vm28, 0.0
    %42 = vst.msk [vmem:[#allocation2 + $0x68] sm:$0xff] %vm28, 0.0
    %43 = vst.msk [vmem:[#allocation2 + $0x70] sm:$0xff] %vm28, 0.0
    %44 = vst.msk [vmem:[#allocation2 + $0x78] sm:$0xff] %vm28, 0.0
  $region29: #{graph_conv_net.3} parent=0 // pred_fallthru
    _
  %v45 = vld [vmem:[%s0] sm:$0x3]
  %v46 = vld [vmem:[%s0 + $0x2] sm:$0x3]
  %v47 = vld [vmem:[%s0 + $0x4] sm:$0x3]
  %v48 = vld [vmem:[%s0 + $0x6] sm:$0x3]
  %v49 = vld [vmem:[%s0 + $0x8] sm:$0x3]
  %v50 = vld [vmem:[%s0 + $0xa] sm:$0x3]
  %v51 = vld [vmem:[%s0 + $0xc] sm:$0x3]
  %v52 = vld [vmem:[%s0 + $0xe] sm:$0x3]
  %v53 = vld [vmem:[%s0 + $0x10] sm:$0x3]
  %v54 = vld [vmem:[%s0 + $0x12] sm:$0x3]
  %v55 = vld [vmem:[%s0 + $0x14] sm:$0x3]
  %v56 = vld [vmem:[%s0 + $0x16] sm:$0x3]
  %v57 = vld [vmem:[%s0 + $0x18] sm:$0x3]
  %v58 = vld [vmem:[%s0 + $0x1a] sm:$0x3]
  %v59 = vld [vmem:[%s0 + $0x1c] sm:$0x3]
  %v60 = vld [vmem:[%s0 + $0x1e] sm:$0x3]
  %v61 = vunpack.c.l.s8.bf16 %v45
  %v62 = vunpack.c.l.s8.bf16 %v46
  %v63 = vunpack.c.l.s8.bf16 %v47
  %v64 = vunpack.c.l.s8.bf16 %v48
  %v65 = vunpack.c.l.s8.bf16 %v49
  %v66 = vunpack.c.l.s8.bf16 %v50
  %v67 = vunpack.c.l.s8.bf16 %v51
  %v68 = vunpack.c.l.s8.bf16 %v52
  %v69 = vunpack.c.l.s8.bf16 %v53
  %v70 = vunpack.c.l.s8.bf16 %v54
  %v71 = vunpack.c.l.s8.bf16 %v55
  %v72 = vunpack.c.l.s8.bf16 %v56
  %v73 = vunpack.c.l.s8.bf16 %v57
  %v74 = vunpack.c.l.s8.bf16 %v58
  %v75 = vunpack.c.l.s8.bf16 %v59
  %v76 = vunpack.c.l.s8.bf16 %v60
  %v77 = vld [vmem:[#allocation2] sm:$0xff]
  %v78 = vld [vmem:[#allocation2 + $0x8] sm:$0xff]
  %v79 = vld [vmem:[#allocation2 + $0x10] sm:$0xff]
  %v80 = vld [vmem:[#allocation2 + $0x18] sm:$0xff]
  %v81 = vld [vmem:[#allocation2 + $0x20] sm:$0xff]
  %v82 = vld [vmem:[#allocation2 + $0x28] sm:$0xff]
  %v83 = vld [vmem:[#allocation2 + $0x30] sm:$0xff]
  %v84 = vld [vmem:[#allocation2 + $0x38] sm:$0xff]
  %v85 = vld [vmem:[#allocation2 + $0x40] sm:$0xff]
  %v86 = vld [vmem:[#allocation2 + $0x48] sm:$0xff]
  %v87 = vld [vmem:[#allocation2 + $0x50] sm:$0xff]
  %v88 = vld [vmem:[#allocation2 + $0x58] sm:$0xff]
  %v89 = vld [vmem:[#allocation2 + $0x60] sm:$0xff]
  %v90 = vld [vmem:[#allocation2 + $0x68] sm:$0xff]
  %v91 = vld [vmem:[#allocation2 + $0x70] sm:$0xff]
  %v92 = vld [vmem:[#allocation2 + $0x78] sm:$0xff]
  %v93 = vld [vmem:[%s1] sm:$0xf]
  %v94 = vld [vmem:[%s1 + $0x4] sm:$0xf]
  %v95 = vld [vmem:[%s1 + $0x8] sm:$0xf]
  %v96 = vld [vmem:[%s1 + $0xc] sm:$0xf]
  %v97 = vld [vmem:[%s1 + $0x10] sm:$0xf]
  %v98 = vld [vmem:[%s1 + $0x14] sm:$0xf]
  %v99 = vld [vmem:[%s1 + $0x18] sm:$0xf]
  %v100 = vld [vmem:[%s1 + $0x1c] sm:$0xf]
  %v101 = vld [vmem:[%s1 + $0x20] sm:$0xf]
  %v102 = vld [vmem:[%s1 + $0x24] sm:$0xf]
  %v103 = vld [vmem:[%s1 + $0x28] sm:$0xf]
  %v104 = vld [vmem:[%s1 + $0x2c] sm:$0xf]
  %v105 = vld [vmem:[%s1 + $0x30] sm:$0xf]
  %v106 = vld [vmem:[%s1 + $0x34] sm:$0xf]
  %v107 = vld [vmem:[%s1 + $0x38] sm:$0xf]
  %v108 = vld [vmem:[%s1 + $0x3c] sm:$0xf]
  %v125 = vunpack.c.l.b16 %v61
  %v126 = vunpack.c.l.b16 %v62
  %v127 = vunpack.c.l.b16 %v63
  %v128 = vunpack.c.l.b16 %v64
  %v129 = vunpack.c.l.b16 %v65
  %v130 = vunpack.c.l.b16 %v66
  %v131 = vunpack.c.l.b16 %v67
  %v132 = vunpack.c.l.b16 %v68
  %v133 = vunpack.c.l.b16 %v69
  %v134 = vunpack.c.l.b16 %v70
  %v135 = vunpack.c.l.b16 %v71
  %v136 = vunpack.c.l.b16 %v72
  %v137 = vunpack.c.l.b16 %v73
  %v138 = vunpack.c.l.b16 %v74
  %v139 = vunpack.c.l.b16 %v75
  %v140 = vunpack.c.l.b16 %v76
  %v141 = vpack.c.b16 %v126, %v125
  %v142 = vpack.c.b16 %v128, %v127
  %v143 = vpack.c.b16 %v130, %v129
  %v144 = vpack.c.b16 %v132, %v131
  %v145 = vpack.c.b16 %v134, %v133
  %v146 = vpack.c.b16 %v136, %v135
  %v147 = vpack.c.b16 %v138, %v137
  %v148 = vpack.c.b16 %v140, %v139
  %v173 = vunpack.c.l.b16 %v93
  %v174 = vunpack.c.l.b16 %v94
  %v175 = vunpack.c.l.b16 %v95
  %v176 = vunpack.c.l.b16 %v96
  %v177 = vunpack.c.l.b16 %v97
  %v178 = vunpack.c.l.b16 %v98
  %v179 = vunpack.c.l.b16 %v99
  %v180 = vunpack.c.l.b16 %v100
  %v181 = vunpack.c.l.b16 %v101
  %v182 = vunpack.c.l.b16 %v102
  %v183 = vunpack.c.l.b16 %v103
  %v184 = vunpack.c.l.b16 %v104
  %v185 = vunpack.c.l.b16 %v105
  %v186 = vunpack.c.l.b16 %v106
  %v187 = vunpack.c.l.b16 %v107
  %v188 = vunpack.c.l.b16 %v108
  %v189 = vpack.c.b16 %v174, %v173
  %v190 = vpack.c.b16 %v176, %v175
  %v191 = vpack.c.b16 %v178, %v177
  %v192 = vpack.c.b16 %v180, %v179
  %v193 = vpack.c.b16 %v182, %v181
  %v194 = vpack.c.b16 %v184, %v183
  %v195 = vpack.c.b16 %v186, %v185
  %v196 = vpack.c.b16 %v188, %v187
  %205 = vmatprep.subr.bf16.mxu0 0
  %206 = vmatpush1.bf16.msra.mxu0 %v196
  %207 = vmatprep.subr.bf16.mxu0 0
  %208 = vmatpush1.bf16.msra.mxu0 %v195
  %209 = vmatprep.subr.bf16.mxu0 0
  %210 = vmatpush1.bf16.msra.mxu0 %v194
  %211 = vmatprep.subr.bf16.mxu0 0
  %212 = vmatpush1.bf16.msra.mxu0 %v193
  %213 = vmatprep.subr.bf16.mxu0 0
  %214 = vmatpush1.bf16.msra.mxu0 %v192
  %215 = vmatprep.subr.bf16.mxu0 0
  %216 = vmatpush1.bf16.msra.mxu0 %v191
  %217 = vmatprep.subr.bf16.mxu0 0
  %218 = vmatpush1.bf16.msra.mxu0 %v190
  %219 = vmatprep.subr.bf16.mxu0 0
  %220 = vmatpush1.bf16.msra.mxu0 %v189
  %221 = vmatprep.subr.bf16.mxu0 0
  %222 = vmatpush2.bf16.msra.mxu0 0
  %223 = vmatprep.subr.bf16.mxu0 0
  %224 = vmatpush2.bf16.msra.mxu0 0
  %225 = vmatprep.subr.bf16.mxu0 0
  %226 = vmatpush2.bf16.msra.mxu0 0
  %227 = vmatprep.subr.bf16.mxu0 0
  %228 = vmatpush2.bf16.msra.mxu0 0
  %229 = vmatprep.subr.bf16.mxu0 0
  %230 = vmatpush2.bf16.msra.mxu0 0
  %231 = vmatprep.subr.bf16.mxu0 0
  %232 = vmatpush2.bf16.msra.mxu0 0
  %233 = vmatprep.subr.bf16.mxu0 0
  %234 = vmatpush2.bf16.msra.mxu0 0
  %235 = vmatprep.subr.bf16.mxu0 0
  %236 = vmatpush2.bf16.msra.mxu0 0
  %237 = vmatprep.mubr.bf16.mxu0 0
  %238 = vmatmul.mubr.bf16.gmra.mxu0 %v141
  %v239 = vpop.f32.mrf.mxu0
  %v240 = vadd.f32 0.0, %v239
  %v241 = vpop.f32.mrf.mxu0
  %v242 = vpop.f32.mrf.mxu0
  %v243 = vadd.f32 0.0, %v242
  %v244 = vpop.f32.mrf.mxu0
  %245 = vmatprep.mubr.bf16.mxu0 0
  %246 = vmatmul.mubr.bf16.gmra.mxu0 %v142
  %v247 = vpop.f32.mrf.mxu0
  %v248 = vadd.f32 0.0, %v247
  %v249 = vpop.f32.mrf.mxu0
  %v250 = vpop.f32.mrf.mxu0
  %v251 = vadd.f32 0.0, %v250
  %v252 = vpop.f32.mrf.mxu0
  %253 = vmatprep.mubr.bf16.mxu0 0
  %254 = vmatmul.mubr.bf16.gmra.mxu0 %v143
  %v255 = vpop.f32.mrf.mxu0
  %v256 = vadd.f32 0.0, %v255
  %v257 = vpop.f32.mrf.mxu0
  %v258 = vpop.f32.mrf.mxu0
  %v259 = vadd.f32 0.0, %v258
  %v260 = vpop.f32.mrf.mxu0
  %261 = vmatprep.mubr.bf16.mxu0 0
  %262 = vmatmul.mubr.bf16.gmra.mxu0 %v144
  %v263 = vpop.f32.mrf.mxu0
  %v264 = vadd.f32 0.0, %v263
  %v265 = vpop.f32.mrf.mxu0
  %v266 = vpop.f32.mrf.mxu0
  %v267 = vadd.f32 0.0, %v266
  %v268 = vpop.f32.mrf.mxu0
  %269 = vmatprep.mubr.bf16.mxu0 0
  %270 = vmatmul.mubr.bf16.gmra.mxu0 %v145
  %v271 = vpop.f32.mrf.mxu0
  %v272 = vadd.f32 0.0, %v271
  %v273 = vpop.f32.mrf.mxu0
  %v274 = vpop.f32.mrf.mxu0
  %v275 = vadd.f32 0.0, %v274
  %v276 = vpop.f32.mrf.mxu0
  %277 = vmatprep.mubr.bf16.mxu0 0
  %278 = vmatmul.mubr.bf16.gmra.mxu0 %v146
  %v279 = vpop.f32.mrf.mxu0
  %v280 = vadd.f32 0.0, %v279
  %v281 = vpop.f32.mrf.mxu0
  %v282 = vpop.f32.mrf.mxu0
  %v283 = vadd.f32 0.0, %v282
  %v284 = vpop.f32.mrf.mxu0
  %285 = vmatprep.mubr.bf16.mxu0 0
  %286 = vmatmul.mubr.bf16.gmra.mxu0 %v147
  %v287 = vpop.f32.mrf.mxu0
  %v288 = vadd.f32 0.0, %v287
  %v289 = vpop.f32.mrf.mxu0
  %v290 = vpop.f32.mrf.mxu0
  %v291 = vadd.f32 0.0, %v290
  %v292 = vpop.f32.mrf.mxu0
  %293 = vmatprep.mubr.bf16.mxu0 0
  %294 = vmatmul.mubr.bf16.gmra.mxu0 %v148
  %v295 = vpop.f32.mrf.mxu0
  %v296 = vadd.f32 0.0, %v295
  %v297 = vpop.f32.mrf.mxu0
  %v298 = vpop.f32.mrf.mxu0
  %v299 = vadd.f32 0.0, %v298
  %v300 = vpop.f32.mrf.mxu0
  %301 = vdwg.mxu0
  %v302 = vadd.f32 %v77, %v240
  %v303 = vadd.f32 %v78, %v243
  %v304 = vadd.f32 %v79, %v248
  %v305 = vadd.f32 %v80, %v251
  %v306 = vadd.f32 %v81, %v256
  %v307 = vadd.f32 %v82, %v259
  %v308 = vadd.f32 %v83, %v264
  %v309 = vadd.f32 %v84, %v267
  %v310 = vadd.f32 %v85, %v272
  %v311 = vadd.f32 %v86, %v275
  %v312 = vadd.f32 %v87, %v280
  %v313 = vadd.f32 %v88, %v283
  %v314 = vadd.f32 %v89, %v288
  %v315 = vadd.f32 %v90, %v291
  %v316 = vadd.f32 %v91, %v296
  %v317 = vadd.f32 %v92, %v299
  %vm318 = vcmask 261120
  %319 = vst.msk [vmem:[#allocation2] sm:$0xff] %vm318, %v302
  %320 = vst.msk [vmem:[#allocation2 + $0x8] sm:$0xff] %vm318, %v303
  %321 = vst.msk [vmem:[#allocation2 + $0x10] sm:$0xff] %vm318, %v304
  %322 = vst.msk [vmem:[#allocation2 + $0x18] sm:$0xff] %vm318, %v305
  %323 = vst.msk [vmem:[#allocation2 + $0x20] sm:$0xff] %vm318, %v306
  %324 = vst.msk [vmem:[#allocation2 + $0x28] sm:$0xff] %vm318, %v307
  %325 = vst.msk [vmem:[#allocation2 + $0x30] sm:$0xff] %vm318, %v308
  %326 = vst.msk [vmem:[#allocation2 + $0x38] sm:$0xff] %vm318, %v309
  %327 = vst.msk [vmem:[#allocation2 + $0x40] sm:$0xff] %vm318, %v310
  %328 = vst.msk [vmem:[#allocation2 + $0x48] sm:$0xff] %vm318, %v311
  %329 = vst.msk [vmem:[#allocation2 + $0x50] sm:$0xff] %vm318, %v312
  %330 = vst.msk [vmem:[#allocation2 + $0x58] sm:$0xff] %vm318, %v313
  %331 = vst.msk [vmem:[#allocation2 + $0x60] sm:$0xff] %vm318, %v314
  %332 = vst.msk [vmem:[#allocation2 + $0x68] sm:$0xff] %vm318, %v315
  %333 = vst.msk [vmem:[#allocation2 + $0x70] sm:$0xff] %vm318, %v316
  %334 = vst.msk [vmem:[#allocation2 + $0x78] sm:$0xff] %vm318, %v317
  // Predicated region
  $region30: #{graph_conv_net.3} parent=0 // pred_check
    %p335 = pneg %p24
  $region31: #{graph_conv_net.3} parent=0 // pred_check_branch
    %337 = sbr.rel (%p335) target = $region33
  $region32: #{graph_conv_net.3} parent=0 // pred_region
    %v338 = vld [vmem:[#allocation2] sm:$0xff]
    %v339 = vld [vmem:[#allocation2 + $0x8] sm:$0xff]
    %v340 = vld [vmem:[#allocation2 + $0x10] sm:$0xff]
    %v341 = vld [vmem:[#allocation2 + $0x18] sm:$0xff]
    %v342 = vld [vmem:[#allocation2 + $0x20] sm:$0xff]
    %v343 = vld [vmem:[#allocation2 + $0x28] sm:$0xff]
    %v344 = vld [vmem:[#allocation2 + $0x30] sm:$0xff]
    %v345 = vld [vmem:[#allocation2 + $0x38] sm:$0xff]
    %v346 = vld [vmem:[#allocation2 + $0x40] sm:$0xff]
    %v347 = vld [vmem:[#allocation2 + $0x48] sm:$0xff]
    %v348 = vld [vmem:[#allocation2 + $0x50] sm:$0xff]
    %v349 = vld [vmem:[#allocation2 + $0x58] sm:$0xff]
    %v350 = vld [vmem:[#allocation2 + $0x60] sm:$0xff]
    %v351 = vld [vmem:[#allocation2 + $0x68] sm:$0xff]
    %v352 = vld [vmem:[#allocation2 + $0x70] sm:$0xff]
    %v353 = vld [vmem:[#allocation2 + $0x78] sm:$0xff]
    %v354 = vpack.c.bf16 %v339, %v338
    %v355 = vpack.c.bf16 %v341, %v340
    %v356 = vpack.c.bf16 %v343, %v342
    %v357 = vpack.c.bf16 %v345, %v344
    %v358 = vpack.c.bf16 %v347, %v346
    %v359 = vpack.c.bf16 %v349, %v348
    %v360 = vpack.c.bf16 %v351, %v350
    %v361 = vpack.c.bf16 %v353, %v352
    %v362 = vld [vmem:[%s3] sm:$0xf]
    %v363 = vld [vmem:[%s3 + $0x4] sm:$0xf]
    %v364 = vld [vmem:[%s3 + $0x8] sm:$0xf]
    %v365 = vld [vmem:[%s3 + $0xc] sm:$0xf]
    %v366 = vld [vmem:[%s2] sm:$0xf]
    %v367 = vld [vmem:[%s2 + $0x4] sm:$0xf]
    %v368 = vld [vmem:[%s2 + $0x8] sm:$0xf]
    %v369 = vld [vmem:[%s2 + $0xc] sm:$0xf]
    %v370 = vld [vmem:[%s2 + $0x10] sm:$0xf]
    %v371 = vld [vmem:[%s2 + $0x14] sm:$0xf]
    %v372 = vld [vmem:[%s2 + $0x18] sm:$0xf]
    %v373 = vld [vmem:[%s2 + $0x1c] sm:$0xf]
    %v374 = vld [vmem:[%s2 + $0x20] sm:$0xf]
    %v375 = vld [vmem:[%s2 + $0x24] sm:$0xf]
    %v376 = vld [vmem:[%s2 + $0x28] sm:$0xf]
    %v377 = vld [vmem:[%s2 + $0x2c] sm:$0xf]
    %v378 = vld [vmem:[%s2 + $0x30] sm:$0xf]
    %v379 = vld [vmem:[%s2 + $0x34] sm:$0xf]
    %v380 = vld [vmem:[%s2 + $0x38] sm:$0xf]
    %v381 = vld [vmem:[%s2 + $0x3c] sm:$0xf]
    %v382 = vld [vmem:[%s4] sm:$0xf]
    %v383 = vld [vmem:[%s4 + $0x4] sm:$0xf]
    %v384 = vld [vmem:[%s4 + $0x8] sm:$0xf]
    %v385 = vld [vmem:[%s4 + $0xc] sm:$0xf]
    %v402 = vunpack.c.l.b16 %v366
    %v403 = vunpack.c.l.b16 %v367
    %v404 = vunpack.c.l.b16 %v368
    %v405 = vunpack.c.l.b16 %v369
    %v406 = vunpack.c.l.b16 %v370
    %v407 = vunpack.c.l.b16 %v371
    %v408 = vunpack.c.l.b16 %v372
    %v409 = vunpack.c.l.b16 %v373
    %v410 = vunpack.c.l.b16 %v374
    %v411 = vunpack.c.l.b16 %v375
    %v412 = vunpack.c.l.b16 %v376
    %v413 = vunpack.c.l.b16 %v377
    %v414 = vunpack.c.l.b16 %v378
    %v415 = vunpack.c.l.b16 %v379
    %v416 = vunpack.c.l.b16 %v380
    %v417 = vunpack.c.l.b16 %v381
    %v418 = vpack.c.b16 %v403, %v402
    %v419 = vpack.c.b16 %v405, %v404
    %v420 = vpack.c.b16 %v407, %v406
    %v421 = vpack.c.b16 %v409, %v408
    %v422 = vpack.c.b16 %v411, %v410
    %v423 = vpack.c.b16 %v413, %v412
    %v424 = vpack.c.b16 %v415, %v414
    %v425 = vpack.c.b16 %v417, %v416
    %v430 = vunpack.c.l.b16 %v382
    %v431 = vunpack.c.l.b16 %v383
    %v432 = vunpack.c.l.b16 %v384
    %v433 = vunpack.c.l.b16 %v385
    %v434 = vpack.c.b16 %v431, %v430
    %v435 = vpack.c.b16 %v433, %v432
    %v439 = vsel %vm318, %v418, 0
    %v442 = vsel %vm318, %v419, 0
    %v445 = vsel %vm318, %v420, 0
    %v448 = vsel %vm318, %v421, 0
    %v451 = vsel %vm318, %v422, 0
    %v454 = vsel %vm318, %v423, 0
    %v457 = vsel %vm318, %v424, 0
    %v460 = vsel %vm318, %v425, 0
    %462 = vmatprep.subr.bf16.mxu0 0
    %463 = vmatpush1.bf16.msra.mxu0 0
    %464 = vmatprep.subr.bf16.mxu0 0
    %465 = vmatpush1.bf16.msra.mxu0 0
    %466 = vmatprep.subr.bf16.mxu0 0
    %467 = vmatpush1.bf16.msra.mxu0 0
    %468 = vmatprep.subr.bf16.mxu0 0
    %469 = vmatpush1.bf16.msra.mxu0 0
    %470 = vmatprep.subr.bf16.mxu0 0
    %471 = vmatpush1.bf16.msra.mxu0 0
    %472 = vmatprep.subr.bf16.mxu0 0
    %473 = vmatpush1.bf16.msra.mxu0 0
    %474 = vmatprep.subr.bf16.mxu0 0
    %475 = vmatpush1.bf16.msra.mxu0 %v435
    %476 = vmatprep.subr.bf16.mxu0 0
    %477 = vmatpush1.bf16.msra.mxu0 %v434
    %478 = vmatprep.subr.bf16.mxu0 0
    %479 = vmatpush2.bf16.msra.mxu0 0
    %480 = vmatprep.subr.bf16.mxu0 0
    %481 = vmatpush2.bf16.msra.mxu0 0
    %482 = vmatprep.subr.bf16.mxu0 0
    %483 = vmatpush2.bf16.msra.mxu0 0
    %484 = vmatprep.subr.bf16.mxu0 0
    %485 = vmatpush2.bf16.msra.mxu0 0
    %486 = vmatprep.subr.bf16.mxu0 0
    %487 = vmatpush2.bf16.msra.mxu0 0
    %488 = vmatprep.subr.bf16.mxu0 0
    %489 = vmatpush2.bf16.msra.mxu0 0
    %490 = vmatprep.subr.bf16.mxu0 0
    %491 = vmatpush2.bf16.msra.mxu0 0
    %492 = vmatprep.subr.bf16.mxu0 0
    %493 = vmatpush2.bf16.msra.mxu0 0
    %494 = vmatprep.mubr.bf16.mxu0 0
    %495 = vmatmul.mubr.bf16.gmra.mxu0 %v439
    %v496 = vpop.f32.mrf.mxu0
    %v497 = vadd.f32 0.0, %v496
    %v498 = vpop.f32.mrf.mxu0
    %v499 = vpop.f32.mrf.mxu0
    %v500 = vadd.f32 0.0, %v499
    %v501 = vpop.f32.mrf.mxu0
    %502 = vmatprep.mubr.bf16.mxu0 0
    %503 = vmatmul.mubr.bf16.gmra.mxu0 %v442
    %v504 = vpop.f32.mrf.mxu0
    %v505 = vadd.f32 0.0, %v504
    %v506 = vpop.f32.mrf.mxu0
    %v507 = vpop.f32.mrf.mxu0
    %v508 = vadd.f32 0.0, %v507
    %v509 = vpop.f32.mrf.mxu0
    %510 = vmatprep.mubr.bf16.mxu0 0
    %511 = vmatmul.mubr.bf16.gmra.mxu0 %v445
    %v512 = vpop.f32.mrf.mxu0
    %v513 = vadd.f32 0.0, %v512
    %v514 = vpop.f32.mrf.mxu0
    %v515 = vpop.f32.mrf.mxu0
    %v516 = vadd.f32 0.0, %v515
    %v517 = vpop.f32.mrf.mxu0
    %518 = vmatprep.mubr.bf16.mxu0 0
    %519 = vmatmul.mubr.bf16.gmra.mxu0 %v448
    %v520 = vpop.f32.mrf.mxu0
    %v521 = vadd.f32 0.0, %v520
    %v522 = vpop.f32.mrf.mxu0
    %v523 = vpop.f32.mrf.mxu0
    %v524 = vadd.f32 0.0, %v523
    %v525 = vpop.f32.mrf.mxu0
    %526 = vmatprep.mubr.bf16.mxu0 0
    %527 = vmatmul.mubr.bf16.gmra.mxu0 %v451
    %v528 = vpop.f32.mrf.mxu0
    %v529 = vadd.f32 0.0, %v528
    %v530 = vpop.f32.mrf.mxu0
    %v531 = vpop.f32.mrf.mxu0
    %v532 = vadd.f32 0.0, %v531
    %v533 = vpop.f32.mrf.mxu0
    %534 = vmatprep.mubr.bf16.mxu0 0
    %535 = vmatmul.mubr.bf16.gmra.mxu0 %v454
    %v536 = vpop.f32.mrf.mxu0
    %v537 = vadd.f32 0.0, %v536
    %v538 = vpop.f32.mrf.mxu0
    %v539 = vpop.f32.mrf.mxu0
    %v540 = vadd.f32 0.0, %v539
    %v541 = vpop.f32.mrf.mxu0
    %542 = vmatprep.mubr.bf16.mxu0 0
    %543 = vmatmul.mubr.bf16.gmra.mxu0 %v457
    %v544 = vpop.f32.mrf.mxu0
    %v545 = vadd.f32 0.0, %v544
    %v546 = vpop.f32.mrf.mxu0
    %v547 = vpop.f32.mrf.mxu0
    %v548 = vadd.f32 0.0, %v547
    %v549 = vpop.f32.mrf.mxu0
    %550 = vmatprep.mubr.bf16.mxu0 0
    %551 = vmatmul.mubr.bf16.gmra.mxu0 %v460
    %v552 = vpop.f32.mrf.mxu0
    %v553 = vadd.f32 0.0, %v552
    %v554 = vpop.f32.mrf.mxu0
    %v555 = vpop.f32.mrf.mxu0
    %v556 = vadd.f32 0.0, %v555
    %v557 = vpop.f32.mrf.mxu0
    %558 = vdwg.mxu0
    %v563 = vunpack.c.l.b16 %v362
    %v564 = vunpack.c.l.b16 %v363
    %v565 = vunpack.c.l.b16 %v364
    %v566 = vunpack.c.l.b16 %v365
    %v567 = vpack.c.b16 %v564, %v563
    %v568 = vpack.c.b16 %v566, %v565
    %v572 = vsel %vm318, %v354, 0
    %v575 = vsel %vm318, %v355, 0
    %v578 = vsel %vm318, %v356, 0
    %v581 = vsel %vm318, %v357, 0
    %v584 = vsel %vm318, %v358, 0
    %v587 = vsel %vm318, %v359, 0
    %v590 = vsel %vm318, %v360, 0
    %v593 = vsel %vm318, %v361, 0
    %595 = vmatprep.subr.bf16.mxu0 0
    %596 = vmatpush1.bf16.msra.mxu0 0
    %597 = vmatprep.subr.bf16.mxu0 0
    %598 = vmatpush1.bf16.msra.mxu0 0
    %599 = vmatprep.subr.bf16.mxu0 0
    %600 = vmatpush1.bf16.msra.mxu0 0
    %601 = vmatprep.subr.bf16.mxu0 0
    %602 = vmatpush1.bf16.msra.mxu0 0
    %603 = vmatprep.subr.bf16.mxu0 0
    %604 = vmatpush1.bf16.msra.mxu0 0
    %605 = vmatprep.subr.bf16.mxu0 0
    %606 = vmatpush1.bf16.msra.mxu0 0
    %607 = vmatprep.subr.bf16.mxu0 0
    %608 = vmatpush1.bf16.msra.mxu0 %v568
    %609 = vmatprep.subr.bf16.mxu0 0
    %610 = vmatpush1.bf16.msra.mxu0 %v567
    %611 = vmatprep.subr.bf16.mxu0 0
    %612 = vmatpush2.bf16.msra.mxu0 0
    %613 = vmatprep.subr.bf16.mxu0 0
    %614 = vmatpush2.bf16.msra.mxu0 0
    %615 = vmatprep.subr.bf16.mxu0 0
    %616 = vmatpush2.bf16.msra.mxu0 0
    %617 = vmatprep.subr.bf16.mxu0 0
    %618 = vmatpush2.bf16.msra.mxu0 0
    %619 = vmatprep.subr.bf16.mxu0 0
    %620 = vmatpush2.bf16.msra.mxu0 0
    %621 = vmatprep.subr.bf16.mxu0 0
    %622 = vmatpush2.bf16.msra.mxu0 0
    %623 = vmatprep.subr.bf16.mxu0 0
    %624 = vmatpush2.bf16.msra.mxu0 0
    %625 = vmatprep.subr.bf16.mxu0 0
    %626 = vmatpush2.bf16.msra.mxu0 0
    %627 = vmatprep.mubr.bf16.mxu0 0
    %628 = vmatmul.mubr.bf16.gmra.mxu0 %v572
    %v629 = vpop.f32.mrf.mxu0
    %v630 = vadd.f32 %v497, %v629
    %v631 = vpop.f32.mrf.mxu0
    %v632 = vpop.f32.mrf.mxu0
    %v633 = vadd.f32 %v500, %v632
    %v634 = vpop.f32.mrf.mxu0
    %635 = vmatprep.mubr.bf16.mxu0 0
    %636 = vmatmul.mubr.bf16.gmra.mxu0 %v575
    %v637 = vpop.f32.mrf.mxu0
    %v638 = vadd.f32 %v505, %v637
    %v639 = vpop.f32.mrf.mxu0
    %v640 = vpop.f32.mrf.mxu0
    %v641 = vadd.f32 %v508, %v640
    %v642 = vpop.f32.mrf.mxu0
    %643 = vmatprep.mubr.bf16.mxu0 0
    %644 = vmatmul.mubr.bf16.gmra.mxu0 %v578
    %v645 = vpop.f32.mrf.mxu0
    %v646 = vadd.f32 %v513, %v645
    %v647 = vpop.f32.mrf.mxu0
    %v648 = vpop.f32.mrf.mxu0
    %v649 = vadd.f32 %v516, %v648
    %v650 = vpop.f32.mrf.mxu0
    %651 = vmatprep.mubr.bf16.mxu0 0
    %652 = vmatmul.mubr.bf16.gmra.mxu0 %v581
    %v653 = vpop.f32.mrf.mxu0
    %v654 = vadd.f32 %v521, %v653
    %v655 = vpop.f32.mrf.mxu0
    %v656 = vpop.f32.mrf.mxu0
    %v657 = vadd.f32 %v524, %v656
    %v658 = vpop.f32.mrf.mxu0
    %659 = vmatprep.mubr.bf16.mxu0 0
    %660 = vmatmul.mubr.bf16.gmra.mxu0 %v584
    %v661 = vpop.f32.mrf.mxu0
    %v662 = vadd.f32 %v529, %v661
    %v663 = vpop.f32.mrf.mxu0
    %v664 = vpop.f32.mrf.mxu0
    %v665 = vadd.f32 %v532, %v664
    %v666 = vpop.f32.mrf.mxu0
    %667 = vmatprep.mubr.bf16.mxu0 0
    %668 = vmatmul.mubr.bf16.gmra.mxu0 %v587
    %v669 = vpop.f32.mrf.mxu0
    %v670 = vadd.f32 %v537, %v669
    %v671 = vpop.f32.mrf.mxu0
    %v672 = vpop.f32.mrf.mxu0
    %v673 = vadd.f32 %v540, %v672
    %v674 = vpop.f32.mrf.mxu0
    %675 = vmatprep.mubr.bf16.mxu0 0
    %676 = vmatmul.mubr.bf16.gmra.mxu0 %v590
    %v677 = vpop.f32.mrf.mxu0
    %v678 = vadd.f32 %v545, %v677
    %v679 = vpop.f32.mrf.mxu0
    %v680 = vpop.f32.mrf.mxu0
    %v681 = vadd.f32 %v548, %v680
    %v682 = vpop.f32.mrf.mxu0
    %683 = vmatprep.mubr.bf16.mxu0 0
    %684 = vmatmul.mubr.bf16.gmra.mxu0 %v593
    %v685 = vpop.f32.mrf.mxu0
    %v686 = vadd.f32 %v553, %v685
    %v687 = vpop.f32.mrf.mxu0
    %v688 = vpop.f32.mrf.mxu0
    %v689 = vadd.f32 %v556, %v688
    %v690 = vpop.f32.mrf.mxu0
    %691 = vdwg.mxu0
    %v692 = vld [vmem:[%s5] sm:$0x1]
    %v694 = vlaneseq
    %v695 = vshrl.u32 %v694, 7
    %v696 = vsub.s32 0, %v695
    %v697 = vrot.slane %v692, %v696
    %v699 = vadd.f32 %v630, %v697
    %v700 = vadd.f32 %v633, %v697
    %v701 = vadd.f32 %v638, %v697
    %v702 = vadd.f32 %v641, %v697
    %v703 = vadd.f32 %v646, %v697
    %v704 = vadd.f32 %v649, %v697
    %v705 = vadd.f32 %v654, %v697
    %v706 = vadd.f32 %v657, %v697
    %v707 = vadd.f32 %v662, %v697
    %v708 = vadd.f32 %v665, %v697
    %v709 = vadd.f32 %v670, %v697
    %v710 = vadd.f32 %v673, %v697
    %v711 = vadd.f32 %v678, %v697
    %v712 = vadd.f32 %v681, %v697
    %v713 = vadd.f32 %v686, %v697
    %v714 = vadd.f32 %v689, %v697
    %715 = vst [vmem:[%s6] sm:$0xff] %v699
    %716 = vst [vmem:[%s6 + $0x8] sm:$0xff] %v700
    %717 = vst [vmem:[%s6 + $0x10] sm:$0xff] %v701
    %718 = vst [vmem:[%s6 + $0x18] sm:$0xff] %v702
    %719 = vst [vmem:[%s6 + $0x20] sm:$0xff] %v703
    %720 = vst [vmem:[%s6 + $0x28] sm:$0xff] %v704
    %721 = vst [vmem:[%s6 + $0x30] sm:$0xff] %v705
    %722 = vst [vmem:[%s6 + $0x38] sm:$0xff] %v706
    %723 = vst [vmem:[%s6 + $0x40] sm:$0xff] %v707
    %724 = vst [vmem:[%s6 + $0x48] sm:$0xff] %v708
    %725 = vst [vmem:[%s6 + $0x50] sm:$0xff] %v709
    %726 = vst [vmem:[%s6 + $0x58] sm:$0xff] %v710
    %727 = vst [vmem:[%s6 + $0x60] sm:$0xff] %v711
    %728 = vst [vmem:[%s6 + $0x68] sm:$0xff] %v712
    %729 = vst [vmem:[%s6 + $0x70] sm:$0xff] %v713
    %730 = vst [vmem:[%s6 + $0x78] sm:$0xff] %v714
  $region33: #{graph_conv_net.3} parent=0 // pred_fallthru
    _
  // Predicated region
  $region34: #{graph_conv_net.3} parent=0 // pred_check
    _
  $region35: #{graph_conv_net.3} parent=0 // pred_check_branch
    %732 = sbr.rel (0) target = $region37
  $region36: #{graph_conv_net.3} parent=0 // pred_region
    _
  $region37: #{graph_conv_net.3} parent=0 // pred_fallthru
    _
  // Predicated region
  $region38: #{graph_conv_net.3} parent=0 // pred_check
    _
  $region39: #{graph_conv_net.3} parent=0 // pred_check_branch
    %734 = sbr.rel (0) target = $region41
  $region40: #{graph_conv_net.3} parent=0 // pred_region
    _
  $region41: #{graph_conv_net.3} parent=0 // pred_fallthru
    _

// kernel: graph_conv_net.2
$region0: #{graph_conv_net.2}
  #allocation0 [shape = 'u32[]', space=smem, size = 0x4, offset = 0x4, fixed_abs, tag = 'smem constant byte address 0x4 - core index']
  #allocation1 [shape = 'u32[144,128]{1,0:T(1,128)}', space=vmem, size = 0x12000, scoped, tag = 'internal scratch']
  #allocation2 [shape = 'f32[128,8]{1,0:T(8,128)}', space=vmem, size = 0x10000, scoped, tag = 'scratch operand']
  %s0 = inlined_call_operand.vmem [shape: s8[128,128], index: 0, kind: input, shape index: {}]
  %s1 = inlined_call_operand.vmem [shape: bf16[128,8], index: 1, kind: input, shape index: {}, may-alias: {1,2}]
  %s2 = inlined_call_operand.vmem [shape: bf16[128,8], index: 2, kind: input, shape index: {}, may-alias: {1,2}]
  %s3 = inlined_call_operand.vmem [shape: bf16[8,128], index: 3, kind: input, shape index: {}]
  %s4 = inlined_call_operand.vmem [shape: bf16[8,128], index: 4, kind: input, shape index: {}]
  %s5 = inlined_call_operand.vmem [shape: f32[1,128], index: 5, kind: input, shape index: {}]
  %s6 = inlined_call_operand.vmem [shape: bf16[128,128], index: 6, kind: output, shape index: {}]
  %s7 = sld [smem:[#allocation0]]
  $region42: #{graph_conv_net.2} parent=0
    _
  %s9 = ssub.s32 1, %s7
  %s10 = scalar_select 0, %s9, %s7
  // Predicated region
  $region2: #{graph_conv_net.2} parent=0 // pred_check
    _
  $region3: #{graph_conv_net.2} parent=0 // pred_check_branch
    %12 = sbr.rel (0) target = $region5
  $region4: #{graph_conv_net.2} parent=0 // pred_region
    _
  $region5: #{graph_conv_net.2} parent=0 // pred_fallthru
    _
  // Predicated region
  $region6: #{graph_conv_net.2} parent=0 // pred_check
    _
  $region7: #{graph_conv_net.2} parent=0 // pred_check_branch
    %14 = sbr.rel (0) target = $region9
  $region8: #{graph_conv_net.2} parent=0 // pred_region
    _
  $region9: #{graph_conv_net.2} parent=0 // pred_fallthru
    _
  // Predicated region
  $region10: #{graph_conv_net.2} parent=0 // pred_check
    _
  $region11: #{graph_conv_net.2} parent=0 // pred_check_branch
    %16 = sbr.rel (0) target = $region13
  $region12: #{graph_conv_net.2} parent=0 // pred_region
    _
  $region13: #{graph_conv_net.2} parent=0 // pred_fallthru
    _
  // Predicated region
  $region14: #{graph_conv_net.2} parent=0 // pred_check
    _
  $region15: #{graph_conv_net.2} parent=0 // pred_check_branch
    %18 = sbr.rel (0) target = $region17
  $region16: #{graph_conv_net.2} parent=0 // pred_region
    _
  $region17: #{graph_conv_net.2} parent=0 // pred_fallthru
    _
  // Predicated region
  $region18: #{graph_conv_net.2} parent=0 // pred_check
    _
  $region19: #{graph_conv_net.2} parent=0 // pred_check_branch
    %20 = sbr.rel (0) target = $region21
  $region20: #{graph_conv_net.2} parent=0 // pred_region
    _
  $region21: #{graph_conv_net.2} parent=0 // pred_fallthru
    _
  // Predicated region
  $region22: #{graph_conv_net.2} parent=0 // pred_check
    _
  $region23: #{graph_conv_net.2} parent=0 // pred_check_branch
    %22 = sbr.rel (0) target = $region25
  $region24: #{graph_conv_net.2} parent=0 // pred_region
    _
  $region25: #{graph_conv_net.2} parent=0 // pred_fallthru
    _
  %p24 = scmp.eq.s32.totalorder 0, 0
  // Predicated region
  $region26: #{graph_conv_net.2} parent=0 // pred_check
    %p25 = pneg %p24
  $region27: #{graph_conv_net.2} parent=0 // pred_check_branch
    %27 = sbr.rel (%p25) target = $region29
  $region28: #{graph_conv_net.2} parent=0 // pred_region
    %vm28 = vcmask 64512
    %29 = vst.msk [vmem:[#allocation2] sm:$0xff] %vm28, 0.0
    %30 = vst.msk [vmem:[#allocation2 + $0x8] sm:$0xff] %vm28, 0.0
    %31 = vst.msk [vmem:[#allocation2 + $0x10] sm:$0xff] %vm28, 0.0
    %32 = vst.msk [vmem:[#allocation2 + $0x18] sm:$0xff] %vm28, 0.0
    %33 = vst.msk [vmem:[#allocation2 + $0x20] sm:$0xff] %vm28, 0.0
    %34 = vst.msk [vmem:[#allocation2 + $0x28] sm:$0xff] %vm28, 0.0
    %35 = vst.msk [vmem:[#allocation2 + $0x30] sm:$0xff] %vm28, 0.0
    %36 = vst.msk [vmem:[#allocation2 + $0x38] sm:$0xff] %vm28, 0.0
    %37 = vst.msk [vmem:[#allocation2 + $0x40] sm:$0xff] %vm28, 0.0
    %38 = vst.msk [vmem:[#allocation2 + $0x48] sm:$0xff] %vm28, 0.0
    %39 = vst.msk [vmem:[#allocation2 + $0x50] sm:$0xff] %vm28, 0.0
    %40 = vst.msk [vmem:[#allocation2 + $0x58] sm:$0xff] %vm28, 0.0
    %41 = vst.msk [vmem:[#allocation2 + $0x60] sm:$0xff] %vm28, 0.0
    %42 = vst.msk [vmem:[#allocation2 + $0x68] sm:$0xff] %vm28, 0.0
    %43 = vst.msk [vmem:[#allocation2 + $0x70] sm:$0xff] %vm28, 0.0
    %44 = vst.msk [vmem:[#allocation2 + $0x78] sm:$0xff] %vm28, 0.0
  $region29: #{graph_conv_net.2} parent=0 // pred_fallthru
    _
  %v45 = vld [vmem:[%s0] sm:$0x3]
  %v46 = vld [vmem:[%s0 + $0x2] sm:$0x3]
  %v47 = vld [vmem:[%s0 + $0x4] sm:$0x3]
  %v48 = vld [vmem:[%s0 + $0x6] sm:$0x3]
  %v49 = vld [vmem:[%s0 + $0x8] sm:$0x3]
  %v50 = vld [vmem:[%s0 + $0xa] sm:$0x3]
  %v51 = vld [vmem:[%s0 + $0xc] sm:$0x3]
  %v52 = vld [vmem:[%s0 + $0xe] sm:$0x3]
  %v53 = vld [vmem:[%s0 + $0x10] sm:$0x3]
  %v54 = vld [vmem:[%s0 + $0x12] sm:$0x3]
  %v55 = vld [vmem:[%s0 + $0x14] sm:$0x3]
  %v56 = vld [vmem:[%s0 + $0x16] sm:$0x3]
  %v57 = vld [vmem:[%s0 + $0x18] sm:$0x3]
  %v58 = vld [vmem:[%s0 + $0x1a] sm:$0x3]
  %v59 = vld [vmem:[%s0 + $0x1c] sm:$0x3]
  %v60 = vld [vmem:[%s0 + $0x1e] sm:$0x3]
  %v61 = vunpack.c.l.s8.bf16 %v45
  %v62 = vunpack.c.l.s8.bf16 %v46
  %v63 = vunpack.c.l.s8.bf16 %v47
  %v64 = vunpack.c.l.s8.bf16 %v48
  %v65 = vunpack.c.l.s8.bf16 %v49
  %v66 = vunpack.c.l.s8.bf16 %v50
  %v67 = vunpack.c.l.s8.bf16 %v51
  %v68 = vunpack.c.l.s8.bf16 %v52
  %v69 = vunpack.c.l.s8.bf16 %v53
  %v70 = vunpack.c.l.s8.bf16 %v54
  %v71 = vunpack.c.l.s8.bf16 %v55
  %v72 = vunpack.c.l.s8.bf16 %v56
  %v73 = vunpack.c.l.s8.bf16 %v57
  %v74 = vunpack.c.l.s8.bf16 %v58
  %v75 = vunpack.c.l.s8.bf16 %v59
  %v76 = vunpack.c.l.s8.bf16 %v60
  %v77 = vld [vmem:[#allocation2] sm:$0xff]
  %v78 = vld [vmem:[#allocation2 + $0x8] sm:$0xff]
  %v79 = vld [vmem:[#allocation2 + $0x10] sm:$0xff]
  %v80 = vld [vmem:[#allocation2 + $0x18] sm:$0xff]
  %v81 = vld [vmem:[#allocation2 + $0x20] sm:$0xff]
  %v82 = vld [vmem:[#allocation2 + $0x28] sm:$0xff]
  %v83 = vld [vmem:[#allocation2 + $0x30] sm:$0xff]
  %v84 = vld [vmem:[#allocation2 + $0x38] sm:$0xff]
  %v85 = vld [vmem:[#allocation2 + $0x40] sm:$0xff]
  %v86 = vld [vmem:[#allocation2 + $0x48] sm:$0xff]
  %v87 = vld [vmem:[#allocation2 + $0x50] sm:$0xff]
  %v88 = vld [vmem:[#allocation2 + $0x58] sm:$0xff]
  %v89 = vld [vmem:[#allocation2 + $0x60] sm:$0xff]
  %v90 = vld [vmem:[#allocation2 + $0x68] sm:$0xff]
  %v91 = vld [vmem:[#allocation2 + $0x70] sm:$0xff]
  %v92 = vld [vmem:[#allocation2 + $0x78] sm:$0xff]
  %v93 = vld [vmem:[%s1] sm:$0xf]
  %v94 = vld [vmem:[%s1 + $0x4] sm:$0xf]
  %v95 = vld [vmem:[%s1 + $0x8] sm:$0xf]
  %v96 = vld [vmem:[%s1 + $0xc] sm:$0xf]
  %v97 = vld [vmem:[%s1 + $0x10] sm:$0xf]
  %v98 = vld [vmem:[%s1 + $0x14] sm:$0xf]
  %v99 = vld [vmem:[%s1 + $0x18] sm:$0xf]
  %v100 = vld [vmem:[%s1 + $0x1c] sm:$0xf]
  %v101 = vld [vmem:[%s1 + $0x20] sm:$0xf]
  %v102 = vld [vmem:[%s1 + $0x24] sm:$0xf]
  %v103 = vld [vmem:[%s1 + $0x28] sm:$0xf]
  %v104 = vld [vmem:[%s1 + $0x2c] sm:$0xf]
  %v105 = vld [vmem:[%s1 + $0x30] sm:$0xf]
  %v106 = vld [vmem:[%s1 + $0x34] sm:$0xf]
  %v107 = vld [vmem:[%s1 + $0x38] sm:$0xf]
  %v108 = vld [vmem:[%s1 + $0x3c] sm:$0xf]
  %v125 = vunpack.c.l.b16 %v61
  %v126 = vunpack.c.l.b16 %v62
  %v127 = vunpack.c.l.b16 %v63
  %v128 = vunpack.c.l.b16 %v64
  %v129 = vunpack.c.l.b16 %v65
  %v130 = vunpack.c.l.b16 %v66
  %v131 = vunpack.c.l.b16 %v67
  %v132 = vunpack.c.l.b16 %v68
  %v133 = vunpack.c.l.b16 %v69
  %v134 = vunpack.c.l.b16 %v70
  %v135 = vunpack.c.l.b16 %v71
  %v136 = vunpack.c.l.b16 %v72
  %v137 = vunpack.c.l.b16 %v73
  %v138 = vunpack.c.l.b16 %v74
  %v139 = vunpack.c.l.b16 %v75
  %v140 = vunpack.c.l.b16 %v76
  %v141 = vpack.c.b16 %v126, %v125
  %v142 = vpack.c.b16 %v128, %v127
  %v143 = vpack.c.b16 %v130, %v129
  %v144 = vpack.c.b16 %v132, %v131
  %v145 = vpack.c.b16 %v134, %v133
  %v146 = vpack.c.b16 %v136, %v135
  %v147 = vpack.c.b16 %v138, %v137
  %v148 = vpack.c.b16 %v140, %v139
  %v173 = vunpack.c.l.b16 %v93
  %v174 = vunpack.c.l.b16 %v94
  %v175 = vunpack.c.l.b16 %v95
  %v176 = vunpack.c.l.b16 %v96
  %v177 = vunpack.c.l.b16 %v97
  %v178 = vunpack.c.l.b16 %v98
  %v179 = vunpack.c.l.b16 %v99
  %v180 = vunpack.c.l.b16 %v100
  %v181 = vunpack.c.l.b16 %v101
  %v182 = vunpack.c.l.b16 %v102
  %v183 = vunpack.c.l.b16 %v103
  %v184 = vunpack.c.l.b16 %v104
  %v185 = vunpack.c.l.b16 %v105
  %v186 = vunpack.c.l.b16 %v106
  %v187 = vunpack.c.l.b16 %v107
  %v188 = vunpack.c.l.b16 %v108
  %v189 = vpack.c.b16 %v174, %v173
  %v190 = vpack.c.b16 %v176, %v175
  %v191 = vpack.c.b16 %v178, %v177
  %v192 = vpack.c.b16 %v180, %v179
  %v193 = vpack.c.b16 %v182, %v181
  %v194 = vpack.c.b16 %v184, %v183
  %v195 = vpack.c.b16 %v186, %v185
  %v196 = vpack.c.b16 %v188, %v187
  %205 = vmatprep.subr.bf16.mxu0 0
  %206 = vmatpush1.bf16.msra.mxu0 %v196
  %207 = vmatprep.subr.bf16.mxu0 0
  %208 = vmatpush1.bf16.msra.mxu0 %v195
  %209 = vmatprep.subr.bf16.mxu0 0
  %210 = vmatpush1.bf16.msra.mxu0 %v194
  %211 = vmatprep.subr.bf16.mxu0 0
  %212 = vmatpush1.bf16.msra.mxu0 %v193
  %213 = vmatprep.subr.bf16.mxu0 0
  %214 = vmatpush1.bf16.msra.mxu0 %v192
  %215 = vmatprep.subr.bf16.mxu0 0
  %216 = vmatpush1.bf16.msra.mxu0 %v191
  %217 = vmatprep.subr.bf16.mxu0 0
  %218 = vmatpush1.bf16.msra.mxu0 %v190
  %219 = vmatprep.subr.bf16.mxu0 0
  %220 = vmatpush1.bf16.msra.mxu0 %v189
  %221 = vmatprep.subr.bf16.mxu0 0
  %222 = vmatpush2.bf16.msra.mxu0 0
  %223 = vmatprep.subr.bf16.mxu0 0
  %224 = vmatpush2.bf16.msra.mxu0 0
  %225 = vmatprep.subr.bf16.mxu0 0
  %226 = vmatpush2.bf16.msra.mxu0 0
  %227 = vmatprep.subr.bf16.mxu0 0
  %228 = vmatpush2.bf16.msra.mxu0 0
  %229 = vmatprep.subr.bf16.mxu0 0
  %230 = vmatpush2.bf16.msra.mxu0 0
  %231 = vmatprep.subr.bf16.mxu0 0
  %232 = vmatpush2.bf16.msra.mxu0 0
  %233 = vmatprep.subr.bf16.mxu0 0
  %234 = vmatpush2.bf16.msra.mxu0 0
  %235 = vmatprep.subr.bf16.mxu0 0
  %236 = vmatpush2.bf16.msra.mxu0 0
  %237 = vmatprep.mubr.bf16.mxu0 0
  %238 = vmatmul.mubr.bf16.gmra.mxu0 %v141
  %v239 = vpop.f32.mrf.mxu0
  %v240 = vadd.f32 0.0, %v239
  %v241 = vpop.f32.mrf.mxu0
  %v242 = vpop.f32.mrf.mxu0
  %v243 = vadd.f32 0.0, %v242
  %v244 = vpop.f32.mrf.mxu0
  %245 = vmatprep.mubr.bf16.mxu0 0
  %246 = vmatmul.mubr.bf16.gmra.mxu0 %v142
  %v247 = vpop.f32.mrf.mxu0
  %v248 = vadd.f32 0.0, %v247
  %v249 = vpop.f32.mrf.mxu0
  %v250 = vpop.f32.mrf.mxu0
  %v251 = vadd.f32 0.0, %v250
  %v252 = vpop.f32.mrf.mxu0
  %253 = vmatprep.mubr.bf16.mxu0 0
  %254 = vmatmul.mubr.bf16.gmra.mxu0 %v143
  %v255 = vpop.f32.mrf.mxu0
  %v256 = vadd.f32 0.0, %v255
  %v257 = vpop.f32.mrf.mxu0
  %v258 = vpop.f32.mrf.mxu0
  %v259 = vadd.f32 0.0, %v258
  %v260 = vpop.f32.mrf.mxu0
  %261 = vmatprep.mubr.bf16.mxu0 0
  %262 = vmatmul.mubr.bf16.gmra.mxu0 %v144
  %v263 = vpop.f32.mrf.mxu0
  %v264 = vadd.f32 0.0, %v263
  %v265 = vpop.f32.mrf.mxu0
  %v266 = vpop.f32.mrf.mxu0
  %v267 = vadd.f32 0.0, %v266
  %v268 = vpop.f32.mrf.mxu0
  %269 = vmatprep.mubr.bf16.mxu0 0
  %270 = vmatmul.mubr.bf16.gmra.mxu0 %v145
  %v271 = vpop.f32.mrf.mxu0
  %v272 = vadd.f32 0.0, %v271
  %v273 = vpop.f32.mrf.mxu0
  %v274 = vpop.f32.mrf.mxu0
  %v275 = vadd.f32 0.0, %v274
  %v276 = vpop.f32.mrf.mxu0
  %277 = vmatprep.mubr.bf16.mxu0 0
  %278 = vmatmul.mubr.bf16.gmra.mxu0 %v146
  %v279 = vpop.f32.mrf.mxu0
  %v280 = vadd.f32 0.0, %v279
  %v281 = vpop.f32.mrf.mxu0
  %v282 = vpop.f32.mrf.mxu0
  %v283 = vadd.f32 0.0, %v282
  %v284 = vpop.f32.mrf.mxu0
  %285 = vmatprep.mubr.bf16.mxu0 0
  %286 = vmatmul.mubr.bf16.gmra.mxu0 %v147
  %v287 = vpop.f32.mrf.mxu0
  %v288 = vadd.f32 0.0, %v287
  %v289 = vpop.f32.mrf.mxu0
  %v290 = vpop.f32.mrf.mxu0
  %v291 = vadd.f32 0.0, %v290
  %v292 = vpop.f32.mrf.mxu0
  %293 = vmatprep.mubr.bf16.mxu0 0
  %294 = vmatmul.mubr.bf16.gmra.mxu0 %v148
  %v295 = vpop.f32.mrf.mxu0
  %v296 = vadd.f32 0.0, %v295
  %v297 = vpop.f32.mrf.mxu0
  %v298 = vpop.f32.mrf.mxu0
  %v299 = vadd.f32 0.0, %v298
  %v300 = vpop.f32.mrf.mxu0
  %301 = vdwg.mxu0
  %v302 = vadd.f32 %v77, %v240
  %v303 = vadd.f32 %v78, %v243
  %v304 = vadd.f32 %v79, %v248
  %v305 = vadd.f32 %v80, %v251
  %v306 = vadd.f32 %v81, %v256
  %v307 = vadd.f32 %v82, %v259
  %v308 = vadd.f32 %v83, %v264
  %v309 = vadd.f32 %v84, %v267
  %v310 = vadd.f32 %v85, %v272
  %v311 = vadd.f32 %v86, %v275
  %v312 = vadd.f32 %v87, %v280
  %v313 = vadd.f32 %v88, %v283
  %v314 = vadd.f32 %v89, %v288
  %v315 = vadd.f32 %v90, %v291
  %v316 = vadd.f32 %v91, %v296
  %v317 = vadd.f32 %v92, %v299
  %vm318 = vcmask 64512
  %319 = vst.msk [vmem:[#allocation2] sm:$0xff] %vm318, %v302
  %320 = vst.msk [vmem:[#allocation2 + $0x8] sm:$0xff] %vm318, %v303
  %321 = vst.msk [vmem:[#allocation2 + $0x10] sm:$0xff] %vm318, %v304
  %322 = vst.msk [vmem:[#allocation2 + $0x18] sm:$0xff] %vm318, %v305
  %323 = vst.msk [vmem:[#allocation2 + $0x20] sm:$0xff] %vm318, %v306
  %324 = vst.msk [vmem:[#allocation2 + $0x28] sm:$0xff] %vm318, %v307
  %325 = vst.msk [vmem:[#allocation2 + $0x30] sm:$0xff] %vm318, %v308
  %326 = vst.msk [vmem:[#allocation2 + $0x38] sm:$0xff] %vm318, %v309
  %327 = vst.msk [vmem:[#allocation2 + $0x40] sm:$0xff] %vm318, %v310
  %328 = vst.msk [vmem:[#allocation2 + $0x48] sm:$0xff] %vm318, %v311
  %329 = vst.msk [vmem:[#allocation2 + $0x50] sm:$0xff] %vm318, %v312
  %330 = vst.msk [vmem:[#allocation2 + $0x58] sm:$0xff] %vm318, %v313
  %331 = vst.msk [vmem:[#allocation2 + $0x60] sm:$0xff] %vm318, %v314
  %332 = vst.msk [vmem:[#allocation2 + $0x68] sm:$0xff] %vm318, %v315
  %333 = vst.msk [vmem:[#allocation2 + $0x70] sm:$0xff] %vm318, %v316
  %334 = vst.msk [vmem:[#allocation2 + $0x78] sm:$0xff] %vm318, %v317
  // Predicated region
  $region30: #{graph_conv_net.2} parent=0 // pred_check
    %p335 = pneg %p24
  $region31: #{graph_conv_net.2} parent=0 // pred_check_branch
    %337 = sbr.rel (%p335) target = $region33
  $region32: #{graph_conv_net.2} parent=0 // pred_region
    %v338 = vld [vmem:[#allocation2] sm:$0xff]
    %v339 = vld [vmem:[#allocation2 + $0x8] sm:$0xff]
    %v340 = vld [vmem:[#allocation2 + $0x10] sm:$0xff]
    %v341 = vld [vmem:[#allocation2 + $0x18] sm:$0xff]
    %v342 = vld [vmem:[#allocation2 + $0x20] sm:$0xff]
    %v343 = vld [vmem:[#allocation2 + $0x28] sm:$0xff]
    %v344 = vld [vmem:[#allocation2 + $0x30] sm:$0xff]
    %v345 = vld [vmem:[#allocation2 + $0x38] sm:$0xff]
    %v346 = vld [vmem:[#allocation2 + $0x40] sm:$0xff]
    %v347 = vld [vmem:[#allocation2 + $0x48] sm:$0xff]
    %v348 = vld [vmem:[#allocation2 + $0x50] sm:$0xff]
    %v349 = vld [vmem:[#allocation2 + $0x58] sm:$0xff]
    %v350 = vld [vmem:[#allocation2 + $0x60] sm:$0xff]
    %v351 = vld [vmem:[#allocation2 + $0x68] sm:$0xff]
    %v352 = vld [vmem:[#allocation2 + $0x70] sm:$0xff]
    %v353 = vld [vmem:[#allocation2 + $0x78] sm:$0xff]
    %v354 = vpack.c.bf16 %v339, %v338
    %v355 = vpack.c.bf16 %v341, %v340
    %v356 = vpack.c.bf16 %v343, %v342
    %v357 = vpack.c.bf16 %v345, %v344
    %v358 = vpack.c.bf16 %v347, %v346
    %v359 = vpack.c.bf16 %v349, %v348
    %v360 = vpack.c.bf16 %v351, %v350
    %v361 = vpack.c.bf16 %v353, %v352
    %v362 = vld [vmem:[%s3] sm:$0xf]
    %v363 = vld [vmem:[%s2] sm:$0xf]
    %v364 = vld [vmem:[%s2 + $0x4] sm:$0xf]
    %v365 = vld [vmem:[%s2 + $0x8] sm:$0xf]
    %v366 = vld [vmem:[%s2 + $0xc] sm:$0xf]
    %v367 = vld [vmem:[%s2 + $0x10] sm:$0xf]
    %v368 = vld [vmem:[%s2 + $0x14] sm:$0xf]
    %v369 = vld [vmem:[%s2 + $0x18] sm:$0xf]
    %v370 = vld [vmem:[%s2 + $0x1c] sm:$0xf]
    %v371 = vld [vmem:[%s2 + $0x20] sm:$0xf]
    %v372 = vld [vmem:[%s2 + $0x24] sm:$0xf]
    %v373 = vld [vmem:[%s2 + $0x28] sm:$0xf]
    %v374 = vld [vmem:[%s2 + $0x2c] sm:$0xf]
    %v375 = vld [vmem:[%s2 + $0x30] sm:$0xf]
    %v376 = vld [vmem:[%s2 + $0x34] sm:$0xf]
    %v377 = vld [vmem:[%s2 + $0x38] sm:$0xf]
    %v378 = vld [vmem:[%s2 + $0x3c] sm:$0xf]
    %v379 = vld [vmem:[%s4] sm:$0xf]
    %v396 = vunpack.c.l.b16 %v363
    %v397 = vunpack.c.l.b16 %v364
    %v398 = vunpack.c.l.b16 %v365
    %v399 = vunpack.c.l.b16 %v366
    %v400 = vunpack.c.l.b16 %v367
    %v401 = vunpack.c.l.b16 %v368
    %v402 = vunpack.c.l.b16 %v369
    %v403 = vunpack.c.l.b16 %v370
    %v404 = vunpack.c.l.b16 %v371
    %v405 = vunpack.c.l.b16 %v372
    %v406 = vunpack.c.l.b16 %v373
    %v407 = vunpack.c.l.b16 %v374
    %v408 = vunpack.c.l.b16 %v375
    %v409 = vunpack.c.l.b16 %v376
    %v410 = vunpack.c.l.b16 %v377
    %v411 = vunpack.c.l.b16 %v378
    %v412 = vpack.c.b16 %v397, %v396
    %v413 = vpack.c.b16 %v399, %v398
    %v414 = vpack.c.b16 %v401, %v400
    %v415 = vpack.c.b16 %v403, %v402
    %v416 = vpack.c.b16 %v405, %v404
    %v417 = vpack.c.b16 %v407, %v406
    %v418 = vpack.c.b16 %v409, %v408
    %v419 = vpack.c.b16 %v411, %v410
    %v421 = vsel %vm318, %v412, 0
    %v424 = vsel %vm318, %v413, 0
    %v427 = vsel %vm318, %v414, 0
    %v430 = vsel %vm318, %v415, 0
    %v433 = vsel %vm318, %v416, 0
    %v436 = vsel %vm318, %v417, 0
    %v439 = vsel %vm318, %v418, 0
    %v442 = vsel %vm318, %v419, 0
    %vm444 = vcmask 1043456
    %v446 = vsel %vm444, %v379, 0
    %448 = vmatprep.subr.bf16.mxu0 0
    %449 = vmatpush1.bf16.msra.mxu0 0
    %450 = vmatprep.subr.bf16.mxu0 0
    %451 = vmatpush1.bf16.msra.mxu0 0
    %452 = vmatprep.subr.bf16.mxu0 0
    %453 = vmatpush1.bf16.msra.mxu0 0
    %454 = vmatprep.subr.bf16.mxu0 0
    %455 = vmatpush1.bf16.msra.mxu0 0
    %456 = vmatprep.subr.bf16.mxu0 0
    %457 = vmatpush1.bf16.msra.mxu0 0
    %458 = vmatprep.subr.bf16.mxu0 0
    %459 = vmatpush1.bf16.msra.mxu0 0
    %460 = vmatprep.subr.bf16.mxu0 0
    %461 = vmatpush1.bf16.msra.mxu0 0
    %462 = vmatprep.subr.bf16.mxu0 0
    %463 = vmatpush1.bf16.msra.mxu0 %v446
    %464 = vmatprep.subr.bf16.mxu0 0
    %465 = vmatpush2.bf16.msra.mxu0 0
    %466 = vmatprep.subr.bf16.mxu0 0
    %467 = vmatpush2.bf16.msra.mxu0 0
    %468 = vmatprep.subr.bf16.mxu0 0
    %469 = vmatpush2.bf16.msra.mxu0 0
    %470 = vmatprep.subr.bf16.mxu0 0
    %471 = vmatpush2.bf16.msra.mxu0 0
    %472 = vmatprep.subr.bf16.mxu0 0
    %473 = vmatpush2.bf16.msra.mxu0 0
    %474 = vmatprep.subr.bf16.mxu0 0
    %475 = vmatpush2.bf16.msra.mxu0 0
    %476 = vmatprep.subr.bf16.mxu0 0
    %477 = vmatpush2.bf16.msra.mxu0 0
    %478 = vmatprep.subr.bf16.mxu0 0
    %479 = vmatpush2.bf16.msra.mxu0 0
    %480 = vmatprep.mubr.bf16.mxu0 0
    %481 = vmatmul.mubr.bf16.gmra.mxu0 %v421
    %v482 = vpop.f32.mrf.mxu0
    %v483 = vadd.f32 0.0, %v482
    %v484 = vpop.f32.mrf.mxu0
    %v485 = vpop.f32.mrf.mxu0
    %v486 = vadd.f32 0.0, %v485
    %v487 = vpop.f32.mrf.mxu0
    %488 = vmatprep.mubr.bf16.mxu0 0
    %489 = vmatmul.mubr.bf16.gmra.mxu0 %v424
    %v490 = vpop.f32.mrf.mxu0
    %v491 = vadd.f32 0.0, %v490
    %v492 = vpop.f32.mrf.mxu0
    %v493 = vpop.f32.mrf.mxu0
    %v494 = vadd.f32 0.0, %v493
    %v495 = vpop.f32.mrf.mxu0
    %496 = vmatprep.mubr.bf16.mxu0 0
    %497 = vmatmul.mubr.bf16.gmra.mxu0 %v427
    %v498 = vpop.f32.mrf.mxu0
    %v499 = vadd.f32 0.0, %v498
    %v500 = vpop.f32.mrf.mxu0
    %v501 = vpop.f32.mrf.mxu0
    %v502 = vadd.f32 0.0, %v501
    %v503 = vpop.f32.mrf.mxu0
    %504 = vmatprep.mubr.bf16.mxu0 0
    %505 = vmatmul.mubr.bf16.gmra.mxu0 %v430
    %v506 = vpop.f32.mrf.mxu0
    %v507 = vadd.f32 0.0, %v506
    %v508 = vpop.f32.mrf.mxu0
    %v509 = vpop.f32.mrf.mxu0
    %v510 = vadd.f32 0.0, %v509
    %v511 = vpop.f32.mrf.mxu0
    %512 = vmatprep.mubr.bf16.mxu0 0
    %513 = vmatmul.mubr.bf16.gmra.mxu0 %v433
    %v514 = vpop.f32.mrf.mxu0
    %v515 = vadd.f32 0.0, %v514
    %v516 = vpop.f32.mrf.mxu0
    %v517 = vpop.f32.mrf.mxu0
    %v518 = vadd.f32 0.0, %v517
    %v519 = vpop.f32.mrf.mxu0
    %520 = vmatprep.mubr.bf16.mxu0 0
    %521 = vmatmul.mubr.bf16.gmra.mxu0 %v436
    %v522 = vpop.f32.mrf.mxu0
    %v523 = vadd.f32 0.0, %v522
    %v524 = vpop.f32.mrf.mxu0
    %v525 = vpop.f32.mrf.mxu0
    %v526 = vadd.f32 0.0, %v525
    %v527 = vpop.f32.mrf.mxu0
    %528 = vmatprep.mubr.bf16.mxu0 0
    %529 = vmatmul.mubr.bf16.gmra.mxu0 %v439
    %v530 = vpop.f32.mrf.mxu0
    %v531 = vadd.f32 0.0, %v530
    %v532 = vpop.f32.mrf.mxu0
    %v533 = vpop.f32.mrf.mxu0
    %v534 = vadd.f32 0.0, %v533
    %v535 = vpop.f32.mrf.mxu0
    %536 = vmatprep.mubr.bf16.mxu0 0
    %537 = vmatmul.mubr.bf16.gmra.mxu0 %v442
    %v538 = vpop.f32.mrf.mxu0
    %v539 = vadd.f32 0.0, %v538
    %v540 = vpop.f32.mrf.mxu0
    %v541 = vpop.f32.mrf.mxu0
    %v542 = vadd.f32 0.0, %v541
    %v543 = vpop.f32.mrf.mxu0
    %544 = vdwg.mxu0
    %v546 = vsel %vm318, %v354, 0
    %v549 = vsel %vm318, %v355, 0
    %v552 = vsel %vm318, %v356, 0
    %v555 = vsel %vm318, %v357, 0
    %v558 = vsel %vm318, %v358, 0
    %v561 = vsel %vm318, %v359, 0
    %v564 = vsel %vm318, %v360, 0
    %v567 = vsel %vm318, %v361, 0
    %v570 = vsel %vm444, %v362, 0
    %572 = vmatprep.subr.bf16.mxu0 0
    %573 = vmatpush1.bf16.msra.mxu0 0
    %574 = vmatprep.subr.bf16.mxu0 0
    %575 = vmatpush1.bf16.msra.mxu0 0
    %576 = vmatprep.subr.bf16.mxu0 0
    %577 = vmatpush1.bf16.msra.mxu0 0
    %578 = vmatprep.subr.bf16.mxu0 0
    %579 = vmatpush1.bf16.msra.mxu0 0
    %580 = vmatprep.subr.bf16.mxu0 0
    %581 = vmatpush1.bf16.msra.mxu0 0
    %582 = vmatprep.subr.bf16.mxu0 0
    %583 = vmatpush1.bf16.msra.mxu0 0
    %584 = vmatprep.subr.bf16.mxu0 0
    %585 = vmatpush1.bf16.msra.mxu0 0
    %586 = vmatprep.subr.bf16.mxu0 0
    %587 = vmatpush1.bf16.msra.mxu0 %v570
    %588 = vmatprep.subr.bf16.mxu0 0
    %589 = vmatpush2.bf16.msra.mxu0 0
    %590 = vmatprep.subr.bf16.mxu0 0
    %591 = vmatpush2.bf16.msra.mxu0 0
    %592 = vmatprep.subr.bf16.mxu0 0
    %593 = vmatpush2.bf16.msra.mxu0 0
    %594 = vmatprep.subr.bf16.mxu0 0
    %595 = vmatpush2.bf16.msra.mxu0 0
    %596 = vmatprep.subr.bf16.mxu0 0
    %597 = vmatpush2.bf16.msra.mxu0 0
    %598 = vmatprep.subr.bf16.mxu0 0
    %599 = vmatpush2.bf16.msra.mxu0 0
    %600 = vmatprep.subr.bf16.mxu0 0
    %601 = vmatpush2.bf16.msra.mxu0 0
    %602 = vmatprep.subr.bf16.mxu0 0
    %603 = vmatpush2.bf16.msra.mxu0 0
    %604 = vmatprep.mubr.bf16.mxu0 0
    %605 = vmatmul.mubr.bf16.gmra.mxu0 %v546
    %v606 = vpop.f32.mrf.mxu0
    %v607 = vadd.f32 %v483, %v606
    %v608 = vpop.f32.mrf.mxu0
    %v609 = vpop.f32.mrf.mxu0
    %v610 = vadd.f32 %v486, %v609
    %v611 = vpop.f32.mrf.mxu0
    %612 = vmatprep.mubr.bf16.mxu0 0
    %613 = vmatmul.mubr.bf16.gmra.mxu0 %v549
    %v614 = vpop.f32.mrf.mxu0
    %v615 = vadd.f32 %v491, %v614
    %v616 = vpop.f32.mrf.mxu0
    %v617 = vpop.f32.mrf.mxu0
    %v618 = vadd.f32 %v494, %v617
    %v619 = vpop.f32.mrf.mxu0
    %620 = vmatprep.mubr.bf16.mxu0 0
    %621 = vmatmul.mubr.bf16.gmra.mxu0 %v552
    %v622 = vpop.f32.mrf.mxu0
    %v623 = vadd.f32 %v499, %v622
    %v624 = vpop.f32.mrf.mxu0
    %v625 = vpop.f32.mrf.mxu0
    %v626 = vadd.f32 %v502, %v625
    %v627 = vpop.f32.mrf.mxu0
    %628 = vmatprep.mubr.bf16.mxu0 0
    %629 = vmatmul.mubr.bf16.gmra.mxu0 %v555
    %v630 = vpop.f32.mrf.mxu0
    %v631 = vadd.f32 %v507, %v630
    %v632 = vpop.f32.mrf.mxu0
    %v633 = vpop.f32.mrf.mxu0
    %v634 = vadd.f32 %v510, %v633
    %v635 = vpop.f32.mrf.mxu0
    %636 = vmatprep.mubr.bf16.mxu0 0
    %637 = vmatmul.mubr.bf16.gmra.mxu0 %v558
    %v638 = vpop.f32.mrf.mxu0
    %v639 = vadd.f32 %v515, %v638
    %v640 = vpop.f32.mrf.mxu0
    %v641 = vpop.f32.mrf.mxu0
    %v642 = vadd.f32 %v518, %v641
    %v643 = vpop.f32.mrf.mxu0
    %644 = vmatprep.mubr.bf16.mxu0 0
    %645 = vmatmul.mubr.bf16.gmra.mxu0 %v561
    %v646 = vpop.f32.mrf.mxu0
    %v647 = vadd.f32 %v523, %v646
    %v648 = vpop.f32.mrf.mxu0
    %v649 = vpop.f32.mrf.mxu0
    %v650 = vadd.f32 %v526, %v649
    %v651 = vpop.f32.mrf.mxu0
    %652 = vmatprep.mubr.bf16.mxu0 0
    %653 = vmatmul.mubr.bf16.gmra.mxu0 %v564
    %v654 = vpop.f32.mrf.mxu0
    %v655 = vadd.f32 %v531, %v654
    %v656 = vpop.f32.mrf.mxu0
    %v657 = vpop.f32.mrf.mxu0
    %v658 = vadd.f32 %v534, %v657
    %v659 = vpop.f32.mrf.mxu0
    %660 = vmatprep.mubr.bf16.mxu0 0
    %661 = vmatmul.mubr.bf16.gmra.mxu0 %v567
    %v662 = vpop.f32.mrf.mxu0
    %v663 = vadd.f32 %v539, %v662
    %v664 = vpop.f32.mrf.mxu0
    %v665 = vpop.f32.mrf.mxu0
    %v666 = vadd.f32 %v542, %v665
    %v667 = vpop.f32.mrf.mxu0
    %668 = vdwg.mxu0
    %v669 = vld [vmem:[%s5] sm:$0x1]
    %v671 = vlaneseq
    %v672 = vshrl.u32 %v671, 7
    %v673 = vsub.s32 0, %v672
    %v674 = vrot.slane %v669, %v673
    %v676 = vadd.f32 %v607, %v674
    %v677 = vadd.f32 %v610, %v674
    %v678 = vadd.f32 %v615, %v674
    %v679 = vadd.f32 %v618, %v674
    %v680 = vadd.f32 %v623, %v674
    %v681 = vadd.f32 %v626, %v674
    %v682 = vadd.f32 %v631, %v674
    %v683 = vadd.f32 %v634, %v674
    %v684 = vadd.f32 %v639, %v674
    %v685 = vadd.f32 %v642, %v674
    %v686 = vadd.f32 %v647, %v674
    %v687 = vadd.f32 %v650, %v674
    %v688 = vadd.f32 %v655, %v674
    %v689 = vadd.f32 %v658, %v674
    %v690 = vadd.f32 %v663, %v674
    %v691 = vadd.f32 %v666, %v674
    %v692 = vmax.f32 %v676, 0.0
    %v693 = vmax.f32 %v677, 0.0
    %v694 = vmax.f32 %v678, 0.0
    %v695 = vmax.f32 %v679, 0.0
    %v696 = vmax.f32 %v680, 0.0
    %v697 = vmax.f32 %v681, 0.0
    %v698 = vmax.f32 %v682, 0.0
    %v699 = vmax.f32 %v683, 0.0
    %v700 = vmax.f32 %v684, 0.0
    %v701 = vmax.f32 %v685, 0.0
    %v702 = vmax.f32 %v686, 0.0
    %v703 = vmax.f32 %v687, 0.0
    %v704 = vmax.f32 %v688, 0.0
    %v705 = vmax.f32 %v689, 0.0
    %v706 = vmax.f32 %v690, 0.0
    %v707 = vmax.f32 %v691, 0.0
    %v708 = vpack.c.bf16 %v693, %v692
    %v709 = vpack.c.bf16 %v695, %v694
    %v710 = vpack.c.bf16 %v697, %v696
    %v711 = vpack.c.bf16 %v699, %v698
    %v712 = vpack.c.bf16 %v701, %v700
    %v713 = vpack.c.bf16 %v703, %v702
    %v714 = vpack.c.bf16 %v705, %v704
    %v715 = vpack.c.bf16 %v707, %v706
    %v724 = vunpack.c.l.b16 %v708
    %v725 = vunpack.c.h.b16 %v708
    %v726 = vunpack.c.l.b16 %v709
    %v727 = vunpack.c.h.b16 %v709
    %v728 = vunpack.c.l.b16 %v710
    %v729 = vunpack.c.h.b16 %v710
    %v730 = vunpack.c.l.b16 %v711
    %v731 = vunpack.c.h.b16 %v711
    %v732 = vunpack.c.l.b16 %v712
    %v733 = vunpack.c.h.b16 %v712
    %v734 = vunpack.c.l.b16 %v713
    %v735 = vunpack.c.h.b16 %v713
    %v736 = vunpack.c.l.b16 %v714
    %v737 = vunpack.c.h.b16 %v714
    %v738 = vunpack.c.l.b16 %v715
    %v739 = vunpack.c.h.b16 %v715
    %v740 = vpack.c.b16 %v724, %v724
    %v741 = vpack.c.b16 %v725, %v725
    %v742 = vpack.c.b16 %v726, %v726
    %v743 = vpack.c.b16 %v727, %v727
    %v744 = vpack.c.b16 %v728, %v728
    %v745 = vpack.c.b16 %v729, %v729
    %v746 = vpack.c.b16 %v730, %v730
    %v747 = vpack.c.b16 %v731, %v731
    %v748 = vpack.c.b16 %v732, %v732
    %v749 = vpack.c.b16 %v733, %v733
    %v750 = vpack.c.b16 %v734, %v734
    %v751 = vpack.c.b16 %v735, %v735
    %v752 = vpack.c.b16 %v736, %v736
    %v753 = vpack.c.b16 %v737, %v737
    %v754 = vpack.c.b16 %v738, %v738
    %v755 = vpack.c.b16 %v739, %v739
    %772 = vst [vmem:[%s6] sm:$0xf] %v740
    %773 = vst [vmem:[%s6 + $0x4] sm:$0xf] %v741
    %774 = vst [vmem:[%s6 + $0x8] sm:$0xf] %v742
    %775 = vst [vmem:[%s6 + $0xc] sm:$0xf] %v743
    %776 = vst [vmem:[%s6 + $0x10] sm:$0xf] %v744
    %777 = vst [vmem:[%s6 + $0x14] sm:$0xf] %v745
    %778 = vst [vmem:[%s6 + $0x18] sm:$0xf] %v746
    %779 = vst [vmem:[%s6 + $0x1c] sm:$0xf] %v747
    %780 = vst [vmem:[%s6 + $0x20] sm:$0xf] %v748
    %781 = vst [vmem:[%s6 + $0x24] sm:$0xf] %v749
    %782 = vst [vmem:[%s6 + $0x28] sm:$0xf] %v750
    %783 = vst [vmem:[%s6 + $0x2c] sm:$0xf] %v751
    %784 = vst [vmem:[%s6 + $0x30] sm:$0xf] %v752
    %785 = vst [vmem:[%s6 + $0x34] sm:$0xf] %v753
    %786 = vst [vmem:[%s6 + $0x38] sm:$0xf] %v754
    %787 = vst [vmem:[%s6 + $0x3c] sm:$0xf] %v755
  $region33: #{graph_conv_net.2} parent=0 // pred_fallthru
    _
  // Predicated region
  $region34: #{graph_conv_net.2} parent=0 // pred_check
    _
  $region35: #{graph_conv_net.2} parent=0 // pred_check_branch
    %789 = sbr.rel (0) target = $region37
  $region36: #{graph_conv_net.2} parent=0 // pred_region
    _
  $region37: #{graph_conv_net.2} parent=0 // pred_fallthru
    _
  // Predicated region
  $region38: #{graph_conv_net.2} parent=0 // pred_check
    _
  $region39: #{graph_conv_net.2} parent=0 // pred_check_branch
    %791 = sbr.rel (0) target = $region41
  $region40: #{graph_conv_net.2} parent=0 // pred_region
    _
  $region41: #{graph_conv_net.2} parent=0 // pred_fallthru
    _

</llo_original>
